<compile_context>
chip_gen: v6e
topology: v6e:2x2x1
jax: 0.10.0
libtpu: 0.0.40
codegen_flags: <defaults>
</compile_context>

<pallas_src>
import functools

import jax
import jax.numpy as jnp
from jax.experimental import pallas as pl
from jax.experimental.pallas import tpu as pltpu


def _disc_kernel(x_ref, w1_ref, b1_ref, w2_ref, b2_ref, w34_ref, b34_ref,
                 o_ref):
    """Fused discriminator MLP on one (block_b, im_dim) batch tile.

    Layers 3+4 arrive pre-folded as a single (1, 2h) weight row + scalar bias.
    Writes a lane-major (1, block_b) output row so stores are dense.
    """
    f32 = jnp.float32
    x = x_ref[...]
    cd = x.dtype  # compute dtype fed to the MXU (f32 or bf16)

    # Layer 1: Linear(im_dim -> 4h) + LeakyReLU(0.2)   (f32 accumulation)
    h = jnp.dot(x, w1_ref[...], preferred_element_type=f32) + b1_ref[...]
    h = jnp.where(h > 0, h, 0.2 * h).astype(cd)

    # Layer 2: Linear(4h -> 2h) + LeakyReLU(0.2)
    h = jnp.dot(h, w2_ref[...], preferred_element_type=f32) + b2_ref[...]
    h = jnp.where(h > 0, h, 0.2 * h).astype(cd)

    # Folded layers 3+4: Linear(2h -> h) -> Linear(h -> 1) == Linear(2h -> 1).
    # Contract hidden of w34_row (1, 2h) with hidden of h (block_b, 2h):
    # (1, block_b).  Same contraction pattern as q @ k^T in attention, so the
    # MXU consumes h directly (no activation-block transpose); the per-row
    # scalar lands on the lane axis for a dense store.
    out = jax.lax.dot_general(
        w34_ref[...], h,
        dimension_numbers=(((1,), (1,)), ((), ())),
        preferred_element_type=f32)
    o_ref[...] = (out + b34_ref[0, 0]).astype(o_ref.dtype)


def _pick_block_b(batch, *, min_rows_per_core=256, max_block_b=2048):
    """Pick the batch tile.

    Single tile (grid=(1,)) on 1-TC chips (v5e/v6e): per-step overhead ~0.35us
    is a big slice of a ~1-2us kernel.  On chips reporting >1 TensorCore
    (v7x megacore) split evenly so both cores get work, provided each tile
    stays reasonably sized.  Cap the tile so x/intermediates stay comfortably
    inside the v7x 32 MiB default scoped-VMEM budget.
    """
    try:
        cores = int(getattr(jax.devices()[0], "num_cores", 1) or 1)
    except Exception:  # pragma: no cover - conservative fallback
        cores = 1
    cores = max(1, min(cores, 2))
    if cores > 1 and batch >= cores * min_rows_per_core:
        block_b = pl.cdiv(batch, cores)
    else:
        block_b = batch
    return min(block_b, max_block_b)


@functools.partial(jax.jit, static_argnames=("block_b", "compute_dtype"))
def discriminator_forward(x, params, *, block_b=None,
                          compute_dtype=jnp.float32):
    """x: (B, im_dim). params: dict of (in,out) weights, (1,out) biases.

    Returns (B, 1) float32 logits.
    """
    B, im_dim = x.shape
    h4 = params["w1"].shape[1]
    h2 = params["w2"].shape[1]

    if block_b is None:
        block_b = _pick_block_b(B)
    block_b = min(block_b, B)           # full-extent block bypasses (8,128)
    grid = (pl.cdiv(B, block_b),)

    cd = compute_dtype
    # Only cast when needed; for the bf16 path, prefer casting at the producer
    # so the wrapper doesn't add an extra HBM read/write pass over x.
    xc = x if x.dtype == cd else x.astype(cd)
    w1 = params["w1"].astype(cd)
    w2 = params["w2"].astype(cd)
    b1 = params["b1"].astype(jnp.float32)
    b2 = params["b2"].astype(jnp.float32)

    # Fold Linear(2h->h) and Linear(h->1) (no activation between them).
    w34 = params["w3"] @ params["w4"]                       # (2h, 1), f32
    b34 = (params["b3"] @ params["w4"]
           + params["b4"]).reshape(1, 1).astype(jnp.float32)  # SMEM scalar
    w34_row = w34.T.astype(cd)                              # (1, 2h)

    def const(arr):
        # Grid-invariant full-array block (weights / bias rows).
        # NOTE: default pipeline mode; at ~74 KB total, tuning buffer counts
        # here is noise.  Revisit (pl.Buffered(1)) only if im_dim/hidden grow.
        return pl.BlockSpec(arr.shape, lambda i: (0, 0))

    itemsize = jnp.dtype(cd).itemsize
    flops = 2 * B * (im_dim * h4 + h4 * h2 + h2 * 1)
    bytes_accessed = (
        B * im_dim * itemsize                               # x
        + (im_dim * h4 + h4 * h2 + h2) * itemsize           # weights
        + (h4 + h2 + 1) * 4                                 # biases (f32)
        + B * 4)                                            # output (f32)
    cost = pl.CostEstimate(flops=flops, transcendentals=0,
                           bytes_accessed=bytes_accessed)

    out_row = pl.pallas_call(
        _disc_kernel,
        out_shape=jax.ShapeDtypeStruct((1, B), jnp.float32),
        grid=grid,
        in_specs=[
            pl.BlockSpec((block_b, im_dim), lambda i: (i, 0)),   # x tile
            const(w1), const(b1),
            const(w2), const(b2),
            const(w34_row),
            pl.BlockSpec(memory_space=pltpu.MemorySpace.SMEM),   # b34 scalar
        ],
        out_specs=pl.BlockSpec((1, block_b), lambda i: (0, i)),  # lane-dense
        compiler_params=pltpu.CompilerParams(
            dimension_semantics=("parallel",),
        ),
        cost_estimate=cost,
    )(xc, w1, b1, w2, b2, w34_row, b34)

    # (1, B) -> (B, 1): same row-major linearization, so this is free.
    return out_row.reshape(B, 1)


def init_params(key, im_dim, hidden_dim):
    """Deterministic synthetic parameters (shapes match the nn.Linear layers)."""
    dims = [
        (im_dim, hidden_dim * 4),
        (hidden_dim * 4, hidden_dim * 2),
        (hidden_dim * 2, hidden_dim),
        (hidden_dim, 1),
    ]
    params = {}
    for n, (fan_in, fan_out) in enumerate(dims, start=1):
        key, kw, kb = jax.random.split(key, 3)
        bound = 1.0 / jnp.sqrt(fan_in)
        # weights stored as (in, out): transpose of torch's (out, in) layout
        params[f"w{n}"] = jax.random.uniform(
            kw, (fan_in, fan_out), jnp.float32, -bound, bound)
        params[f"b{n}"] = jax.random.uniform(
            kb, (1, fan_out), jnp.float32, -bound, bound)
    return params


def reference_forward(x, params):
    """Pure-JAX reference (semantics of the torch module, unfolded layers)."""
    h = x @ params["w1"] + params["b1"]
    h = jnp.where(h > 0, h, 0.2 * h)
    h = h @ params["w2"] + params["b2"]
    h = jnp.where(h > 0, h, 0.2 * h)
    h = h @ params["w3"] + params["b3"]
    return h @ params["w4"] + params["b4"]


if __name__ == "__main__":
    IM_DIM = 64      # im_dim (flattened feature vector)
    HIDDEN = 32      # hidden_dim
    BATCH = 512      # one tile on v5e/v6e; two 256-row tiles on a 2-TC chip

    key = jax.random.PRNGKey(0)
    kx, kp = jax.random.split(key)
    x = jax.random.normal(kx, (BATCH, IM_DIM), jnp.float32)
    params = init_params(kp, IM_DIM, HIDDEN)

    out = discriminator_forward(x, params)
    out = jax.block_until_ready(out)

    ref = reference_forward(x, params)
    assert out.shape == (BATCH, 1), out.shape
    # Layer-3/4 folding only changes f32 rounding; 1e-4 tolerance covers it.
    assert jnp.allclose(out, ref, atol=1e-4, rtol=1e-4), float(
        jnp.max(jnp.abs(out - ref)))

    print("KERNEL_OK")
</pallas_src>

<mosaic_0001>
module attributes {stable_mosaic.version = 11 : i64} {
  func.func @_disc_kernel(%arg0: i32, %arg1: memref<512x64xf32, #tpu.memory_space<vmem>>, %arg2: memref<64x128xf32, #tpu.memory_space<vmem>>, %arg3: memref<1x128xf32, #tpu.memory_space<vmem>>, %arg4: memref<128x64xf32, #tpu.memory_space<vmem>>, %arg5: memref<1x64xf32, #tpu.memory_space<vmem>>, %arg6: memref<1x64xf32, #tpu.memory_space<vmem>>, %arg7: memref<1x1xf32, #tpu.memory_space<smem>>, %arg8: memref<1x512xf32, #tpu.memory_space<vmem>>) attributes {dimension_semantics = [#tpu.dimension_semantics<parallel>], iteration_bounds = array<i64: 1>, scalar_prefetch = 0 : i64, scratch_operands = 0 : i64, tpu.core_type = #tpu.core_type<tc>, window_params = [{transform_indices = @transform_0, window_bounds = array<i64: 512, 64>}, {pipeline_mode = #tpu.pipeline_mode<synchronous>, transform_indices = @transform_1, window_bounds = array<i64: 64, 128>}, {pipeline_mode = #tpu.pipeline_mode<synchronous>, transform_indices = @transform_2, window_bounds = array<i64: 1, 128>}, {pipeline_mode = #tpu.pipeline_mode<synchronous>, transform_indices = @transform_3, window_bounds = array<i64: 128, 64>}, {pipeline_mode = #tpu.pipeline_mode<synchronous>, transform_indices = @transform_4, window_bounds = array<i64: 1, 64>}, {pipeline_mode = #tpu.pipeline_mode<synchronous>, transform_indices = @transform_5, window_bounds = array<i64: 1, 64>}, {transform_indices = @transform_6, window_bounds = array<i64: 1, 1>}, {transform_indices = @transform_7, window_bounds = array<i64: 1, 512>}]} {
    %c0 = arith.constant 0 : index
    %c0_0 = arith.constant 0 : index
    %0 = vector.load %arg1[%c0, %c0_0] : memref<512x64xf32, #tpu.memory_space<vmem>>, vector<512x64xf32>
    %c0_1 = arith.constant 0 : index
    %c0_2 = arith.constant 0 : index
    %1 = vector.load %arg2[%c0_1, %c0_2] : memref<64x128xf32, #tpu.memory_space<vmem>>, vector<64x128xf32>
    %cst = arith.constant dense<0.000000e+00> : vector<512x128xf32>
    %2 = tpu.matmul %0, %1, %cst {dimension_numbers = #tpu.dot_dimension_numbers<[1], [0], [0], [1], [0, 0, 1, 1], [], []>} : vector<512x64xf32>, vector<64x128xf32>, vector<512x128xf32> -> vector<512x128xf32>
    %c0_3 = arith.constant 0 : index
    %c0_4 = arith.constant 0 : index
    %3 = vector.load %arg3[%c0_3, %c0_4] : memref<1x128xf32, #tpu.memory_space<vmem>>, vector<1x128xf32>
    %4 = vector.broadcast %3 : vector<1x128xf32> to vector<512x128xf32>
    %5 = arith.addf %2, %4 : vector<512x128xf32>
    %cst_5 = arith.constant 0.000000e+00 : f32
    %6 = vector.broadcast %cst_5 : f32 to vector<512x128xf32>
    %7 = arith.cmpf ogt, %5, %6 : vector<512x128xf32>
    %cst_6 = arith.constant 2.000000e-01 : f32
    %8 = vector.broadcast %cst_6 : f32 to vector<512x128xf32>
    %9 = arith.mulf %8, %5 : vector<512x128xf32>
    %10 = arith.select %7, %5, %9 : vector<512x128xi1>, vector<512x128xf32>
    %c0_7 = arith.constant 0 : index
    %c0_8 = arith.constant 0 : index
    %11 = vector.load %arg4[%c0_7, %c0_8] : memref<128x64xf32, #tpu.memory_space<vmem>>, vector<128x64xf32>
    %cst_9 = arith.constant dense<0.000000e+00> : vector<512x64xf32>
    %12 = tpu.matmul %10, %11, %cst_9 {dimension_numbers = #tpu.dot_dimension_numbers<[1], [0], [0], [1], [0, 0, 1, 1], [], []>} : vector<512x128xf32>, vector<128x64xf32>, vector<512x64xf32> -> vector<512x64xf32>
    %c0_10 = arith.constant 0 : index
    %c0_11 = arith.constant 0 : index
    %13 = vector.load %arg5[%c0_10, %c0_11] : memref<1x64xf32, #tpu.memory_space<vmem>>, vector<1x64xf32>
    %14 = vector.broadcast %13 : vector<1x64xf32> to vector<512x64xf32>
    %15 = arith.addf %12, %14 : vector<512x64xf32>
    %cst_12 = arith.constant 0.000000e+00 : f32
    %16 = vector.broadcast %cst_12 : f32 to vector<512x64xf32>
    %17 = arith.cmpf ogt, %15, %16 : vector<512x64xf32>
    %cst_13 = arith.constant 2.000000e-01 : f32
    %18 = vector.broadcast %cst_13 : f32 to vector<512x64xf32>
    %19 = arith.mulf %18, %15 : vector<512x64xf32>
    %20 = arith.select %17, %15, %19 : vector<512x64xi1>, vector<512x64xf32>
    %c0_14 = arith.constant 0 : index
    %c0_15 = arith.constant 0 : index
    %21 = vector.load %arg6[%c0_14, %c0_15] : memref<1x64xf32, #tpu.memory_space<vmem>>, vector<1x64xf32>
    %cst_16 = arith.constant dense<0.000000e+00> : vector<1x512xf32>
    %22 = tpu.matmul %21, %20, %cst_16 {dimension_numbers = #tpu.dot_dimension_numbers<[1], [1], [0], [0], [0, 0, 1, 0], [], []>} : vector<1x64xf32>, vector<512x64xf32>, vector<1x512xf32> -> vector<1x512xf32>
    %c0_17 = arith.constant 0 : index
    %c0_18 = arith.constant 0 : index
    %23 = memref.load %arg7[%c0_17, %c0_18] : memref<1x1xf32, #tpu.memory_space<smem>>
    %24 = vector.broadcast %23 : f32 to vector<1x512xf32>
    %25 = arith.addf %22, %24 : vector<1x512xf32>
    %c0_19 = arith.constant 0 : index
    %c0_20 = arith.constant 0 : index
    %26 = vector.load %arg8[%c0_19, %c0_20] : memref<1x512xf32, #tpu.memory_space<vmem>>, vector<1x512xf32>
    tpu.vector_store %arg8[%c0_19, %c0_20], %25 {strides = array<i32>} : memref<1x512xf32, #tpu.memory_space<vmem>>, vector<1x512xf32>,
    return
  }
  func.func @transform_0(%arg0: i32) -> (i32, i32) {
    %c0_i32 = arith.constant 0 : i32
    %c0_i32_0 = arith.constant 0 : i32
    return %arg0, %c0_i32 : i32, i32
  }
  func.func @transform_1(%arg0: i32) -> (i32, i32) {
    %c0_i32 = arith.constant 0 : i32
    %c0_i32_0 = arith.constant 0 : i32
    %c0_i32_1 = arith.constant 0 : i32
    return %c0_i32, %c0_i32_0 : i32, i32
  }
  func.func @transform_2(%arg0: i32) -> (i32, i32) {
    %c0_i32 = arith.constant 0 : i32
    %c0_i32_0 = arith.constant 0 : i32
    %c0_i32_1 = arith.constant 0 : i32
    return %c0_i32, %c0_i32_0 : i32, i32
  }
  func.func @transform_3(%arg0: i32) -> (i32, i32) {
    %c0_i32 = arith.constant 0 : i32
    %c0_i32_0 = arith.constant 0 : i32
    %c0_i32_1 = arith.constant 0 : i32
    return %c0_i32, %c0_i32_0 : i32, i32
  }
  func.func @transform_4(%arg0: i32) -> (i32, i32) {
    %c0_i32 = arith.constant 0 : i32
    %c0_i32_0 = arith.constant 0 : i32
    %c0_i32_1 = arith.constant 0 : i32
    return %c0_i32, %c0_i32_0 : i32, i32
  }
  func.func @transform_5(%arg0: i32) -> (i32, i32) {
    %c0_i32 = arith.constant 0 : i32
    %c0_i32_0 = arith.constant 0 : i32
    %c0_i32_1 = arith.constant 0 : i32
    return %c0_i32, %c0_i32_0 : i32, i32
  }
  func.func @transform_6(%arg0: i32) -> (i32, i32) {
    %c0_i32 = arith.constant 0 : i32
    %c0_i32_0 = arith.constant 0 : i32
    %c0_i32_1 = arith.constant 0 : i32
    return %c0_i32, %c0_i32_0 : i32, i32
  }
  func.func @transform_7(%arg0: i32) -> (i32, i32) {
    %c0_i32 = arith.constant 0 : i32
    %c0_i32_0 = arith.constant 0 : i32
    return %c0_i32, %arg0 : i32, i32
  }
}

</mosaic_0001>

<llo_original>
// kernel: discriminator_forward.1
$region0: #{discriminator_forward.1}
  #allocation0 [shape = 'u32[]', space=smem, size = 0x4, offset = 0x4, fixed_abs, tag = 'smem constant byte address 0x4 - core index']
  #allocation1 [shape = 'u32[144,128]{1,0:T(1,128)}', space=vmem, size = 0x12000, scoped, tag = 'internal scratch']
  #allocation2 [shape = 'f32[1,1]{1,0:T(1,128)S(6)}', space=smem, size = 0x200, scoped, tag = 'scoped memory for discriminator_forward.1']
  %s0 = inlined_call_operand.vmem [shape: f32[512,64], index: 0, kind: input, shape index: {}]
  %s1 = inlined_call_operand.vmem [shape: f32[64,128], index: 1, kind: input, shape index: {}]
  %s2 = inlined_call_operand.vmem [shape: f32[1,128], index: 2, kind: input, shape index: {}]
  %s3 = inlined_call_operand.vmem [shape: f32[128,64], index: 3, kind: input, shape index: {}]
  %s4 = inlined_call_operand.vmem [shape: f32[1,64], index: 4, kind: input, shape index: {}]
  %s5 = inlined_call_operand.vmem [shape: f32[1,64], index: 5, kind: input, shape index: {}]
  %s6 = inlined_call_operand.<no memory space> [shape: f32[1,1], index: 6, kind: input, shape index: {}]
  %s7 = inlined_call_operand.hbm [shape: f32[1,512], index: 7, kind: output, shape index: {}]
  %s8 = sld [smem:[#allocation0]]
  $region38: #{discriminator_forward.1} parent=0
    _
  %s10 = ssub.s32 1, %s8
  %s11 = scalar_select 0, %s10, %s8
  %12 = sst [smem:[#allocation2]] %s6
  $region1: #{discriminator_forward.1} parent=0
    #allocation3 [shape = 'u8[2048]{0}', space=vmem, size = 0x800, scoped, tag = 'output window, operand 0, single buffered']
    #allocation4 [shape = 's32[1]{0}', space=sflag, size = 0x4, scoped, tag = 'scoped memory for discriminator_forward.1']
    %13 = vsyncpa [#allocation4], 0
    // Predicated region
    $region2: #{discriminator_forward.1} parent=1 // pred_check
      _
    $region3: #{discriminator_forward.1} parent=1 // pred_check_branch
      %15 = sbr.rel (0) target = $region5
    $region4: #{discriminator_forward.1} parent=1 // pred_region
      _
    $region5: #{discriminator_forward.1} parent=1 // pred_fallthru
      _
    // Predicated region
    $region6: #{discriminator_forward.1} parent=1 // pred_check
      _
    $region7: #{discriminator_forward.1} parent=1 // pred_check_branch
      %17 = sbr.rel (0) target = $region9
    $region8: #{discriminator_forward.1} parent=1 // pred_region
      _
    $region9: #{discriminator_forward.1} parent=1 // pred_fallthru
      _
    // Predicated region
    $region10: #{discriminator_forward.1} parent=1 // pred_check
      _
    $region11: #{discriminator_forward.1} parent=1 // pred_check_branch
      %19 = sbr.rel (0) target = $region13
    $region12: #{discriminator_forward.1} parent=1 // pred_region
      _
    $region13: #{discriminator_forward.1} parent=1 // pred_fallthru
      _
    // Predicated region
    $region14: #{discriminator_forward.1} parent=1 // pred_check
      _
    $region15: #{discriminator_forward.1} parent=1 // pred_check_branch
      %21 = sbr.rel (0) target = $region17
    $region16: #{discriminator_forward.1} parent=1 // pred_region
      _
    $region17: #{discriminator_forward.1} parent=1 // pred_fallthru
      _
    // Predicated region
    $region18: #{discriminator_forward.1} parent=1 // pred_check
      _
    $region19: #{discriminator_forward.1} parent=1 // pred_check_branch
      %23 = sbr.rel (0) target = $region21
    $region20: #{discriminator_forward.1} parent=1 // pred_region
      _
    $region21: #{discriminator_forward.1} parent=1 // pred_fallthru
      _
    // Predicated region
    $region22: #{discriminator_forward.1} parent=1 // pred_check
      _
    $region23: #{discriminator_forward.1} parent=1 // pred_check_branch
      %25 = sbr.rel (0) target = $region25
    $region24: #{discriminator_forward.1} parent=1 // pred_region
      _
    $region25: #{discriminator_forward.1} parent=1 // pred_fallthru
      _
    // Predicated region
    $region26: #{discriminator_forward.1} parent=1 // pred_check
      _
    $region27: #{discriminator_forward.1} parent=1 // pred_check_branch
      %27 = sbr.rel (0) target = $region29
    $region28: #{discriminator_forward.1} parent=1 // pred_region
      _
    $region29: #{discriminator_forward.1} parent=1 // pred_fallthru
      _
    %v28 = vld [vmem:[%s0] sm:$0xff]
    %v29 = vld [vmem:[%s0 + $0x8] sm:$0xff]
    %v30 = vld [vmem:[%s0 + $0x10] sm:$0xff]
    %v31 = vld [vmem:[%s0 + $0x18] sm:$0xff]
    %v32 = vld [vmem:[%s0 + $0x20] sm:$0xff]
    %v33 = vld [vmem:[%s0 + $0x28] sm:$0xff]
    %v34 = vld [vmem:[%s0 + $0x30] sm:$0xff]
    %v35 = vld [vmem:[%s0 + $0x38] sm:$0xff]
    %v36 = vld [vmem:[%s0 + $0x40] sm:$0xff]
    %v37 = vld [vmem:[%s0 + $0x48] sm:$0xff]
    %v38 = vld [vmem:[%s0 + $0x50] sm:$0xff]
    %v39 = vld [vmem:[%s0 + $0x58] sm:$0xff]
    %v40 = vld [vmem:[%s0 + $0x60] sm:$0xff]
    %v41 = vld [vmem:[%s0 + $0x68] sm:$0xff]
    %v42 = vld [vmem:[%s0 + $0x70] sm:$0xff]
    %v43 = vld [vmem:[%s0 + $0x78] sm:$0xff]
    %v44 = vld [vmem:[%s0 + $0x80] sm:$0xff]
    %v45 = vld [vmem:[%s0 + $0x88] sm:$0xff]
    %v46 = vld [vmem:[%s0 + $0x90] sm:$0xff]
    %v47 = vld [vmem:[%s0 + $0x98] sm:$0xff]
    %v48 = vld [vmem:[%s0 + $0xa0] sm:$0xff]
    %v49 = vld [vmem:[%s0 + $0xa8] sm:$0xff]
    %v50 = vld [vmem:[%s0 + $0xb0] sm:$0xff]
    %v51 = vld [vmem:[%s0 + $0xb8] sm:$0xff]
    %v52 = vld [vmem:[%s0 + $0xc0] sm:$0xff]
    %v53 = vld [vmem:[%s0 + $0xc8] sm:$0xff]
    %v54 = vld [vmem:[%s0 + $0xd0] sm:$0xff]
    %v55 = vld [vmem:[%s0 + $0xd8] sm:$0xff]
    %v56 = vld [vmem:[%s0 + $0xe0] sm:$0xff]
    %v57 = vld [vmem:[%s0 + $0xe8] sm:$0xff]
    %v58 = vld [vmem:[%s0 + $0xf0] sm:$0xff]
    %v59 = vld [vmem:[%s0 + $0xf8] sm:$0xff]
    %v60 = vld [vmem:[%s0 + $0x100] sm:$0xff]
    %v61 = vld [vmem:[%s0 + $0x108] sm:$0xff]
    %v62 = vld [vmem:[%s0 + $0x110] sm:$0xff]
    %v63 = vld [vmem:[%s0 + $0x118] sm:$0xff]
    %v64 = vld [vmem:[%s0 + $0x120] sm:$0xff]
    %v65 = vld [vmem:[%s0 + $0x128] sm:$0xff]
    %v66 = vld [vmem:[%s0 + $0x130] sm:$0xff]
    %v67 = vld [vmem:[%s0 + $0x138] sm:$0xff]
    %v68 = vld [vmem:[%s0 + $0x140] sm:$0xff]
    %v69 = vld [vmem:[%s0 + $0x148] sm:$0xff]
    %v70 = vld [vmem:[%s0 + $0x150] sm:$0xff]
    %v71 = vld [vmem:[%s0 + $0x158] sm:$0xff]
    %v72 = vld [vmem:[%s0 + $0x160] sm:$0xff]
    %v73 = vld [vmem:[%s0 + $0x168] sm:$0xff]
    %v74 = vld [vmem:[%s0 + $0x170] sm:$0xff]
    %v75 = vld [vmem:[%s0 + $0x178] sm:$0xff]
    %v76 = vld [vmem:[%s0 + $0x180] sm:$0xff]
    %v77 = vld [vmem:[%s0 + $0x188] sm:$0xff]
    %v78 = vld [vmem:[%s0 + $0x190] sm:$0xff]
    %v79 = vld [vmem:[%s0 + $0x198] sm:$0xff]
    %v80 = vld [vmem:[%s0 + $0x1a0] sm:$0xff]
    %v81 = vld [vmem:[%s0 + $0x1a8] sm:$0xff]
    %v82 = vld [vmem:[%s0 + $0x1b0] sm:$0xff]
    %v83 = vld [vmem:[%s0 + $0x1b8] sm:$0xff]
    %v84 = vld [vmem:[%s0 + $0x1c0] sm:$0xff]
    %v85 = vld [vmem:[%s0 + $0x1c8] sm:$0xff]
    %v86 = vld [vmem:[%s0 + $0x1d0] sm:$0xff]
    %v87 = vld [vmem:[%s0 + $0x1d8] sm:$0xff]
    %v88 = vld [vmem:[%s0 + $0x1e0] sm:$0xff]
    %v89 = vld [vmem:[%s0 + $0x1e8] sm:$0xff]
    %v90 = vld [vmem:[%s0 + $0x1f0] sm:$0xff]
    %v91 = vld [vmem:[%s0 + $0x1f8] sm:$0xff]
    %v92 = vld [vmem:[%s1] sm:$0xff]
    %v93 = vld [vmem:[%s1 + $0x8] sm:$0xff]
    %v94 = vld [vmem:[%s1 + $0x10] sm:$0xff]
    %v95 = vld [vmem:[%s1 + $0x18] sm:$0xff]
    %v96 = vld [vmem:[%s1 + $0x20] sm:$0xff]
    %v97 = vld [vmem:[%s1 + $0x28] sm:$0xff]
    %v98 = vld [vmem:[%s1 + $0x30] sm:$0xff]
    %v99 = vld [vmem:[%s1 + $0x38] sm:$0xff]
    %v100 = vld [vmem:[%s2] sm:$0x1]
    %v102 = vlaneseq
    %v103 = vshrl.u32 %v102, 7
    %v104 = vsub.s32 0, %v103
    %v105 = vrot.slane %v100, %v104
    %vm107 = vcmask 523264
    %v109 = vsel %vm107, %v28, 0
    %v112 = vsel %vm107, %v29, 0
    %v115 = vsel %vm107, %v30, 0
    %v118 = vsel %vm107, %v31, 0
    %v121 = vsel %vm107, %v32, 0
    %v124 = vsel %vm107, %v33, 0
    %v127 = vsel %vm107, %v34, 0
    %v130 = vsel %vm107, %v35, 0
    %v133 = vsel %vm107, %v36, 0
    %v136 = vsel %vm107, %v37, 0
    %v139 = vsel %vm107, %v38, 0
    %v142 = vsel %vm107, %v39, 0
    %v145 = vsel %vm107, %v40, 0
    %v148 = vsel %vm107, %v41, 0
    %v151 = vsel %vm107, %v42, 0
    %v154 = vsel %vm107, %v43, 0
    %v157 = vsel %vm107, %v44, 0
    %v160 = vsel %vm107, %v45, 0
    %v163 = vsel %vm107, %v46, 0
    %v166 = vsel %vm107, %v47, 0
    %v169 = vsel %vm107, %v48, 0
    %v172 = vsel %vm107, %v49, 0
    %v175 = vsel %vm107, %v50, 0
    %v178 = vsel %vm107, %v51, 0
    %v181 = vsel %vm107, %v52, 0
    %v184 = vsel %vm107, %v53, 0
    %v187 = vsel %vm107, %v54, 0
    %v190 = vsel %vm107, %v55, 0
    %v193 = vsel %vm107, %v56, 0
    %v196 = vsel %vm107, %v57, 0
    %v199 = vsel %vm107, %v58, 0
    %v202 = vsel %vm107, %v59, 0
    %v205 = vsel %vm107, %v60, 0
    %v208 = vsel %vm107, %v61, 0
    %v211 = vsel %vm107, %v62, 0
    %v214 = vsel %vm107, %v63, 0
    %v217 = vsel %vm107, %v64, 0
    %v220 = vsel %vm107, %v65, 0
    %v223 = vsel %vm107, %v66, 0
    %v226 = vsel %vm107, %v67, 0
    %v229 = vsel %vm107, %v68, 0
    %v232 = vsel %vm107, %v69, 0
    %v235 = vsel %vm107, %v70, 0
    %v238 = vsel %vm107, %v71, 0
    %v241 = vsel %vm107, %v72, 0
    %v244 = vsel %vm107, %v73, 0
    %v247 = vsel %vm107, %v74, 0
    %v250 = vsel %vm107, %v75, 0
    %v253 = vsel %vm107, %v76, 0
    %v256 = vsel %vm107, %v77, 0
    %v259 = vsel %vm107, %v78, 0
    %v262 = vsel %vm107, %v79, 0
    %v265 = vsel %vm107, %v80, 0
    %v268 = vsel %vm107, %v81, 0
    %v271 = vsel %vm107, %v82, 0
    %v274 = vsel %vm107, %v83, 0
    %v277 = vsel %vm107, %v84, 0
    %v280 = vsel %vm107, %v85, 0
    %v283 = vsel %vm107, %v86, 0
    %v286 = vsel %vm107, %v87, 0
    %v289 = vsel %vm107, %v88, 0
    %v292 = vsel %vm107, %v89, 0
    %v295 = vsel %vm107, %v90, 0
    %v298 = vsel %vm107, %v91, 0
    %300 = vmatprep.subr.mxu0 0.0
    %301 = vmatpush1.msra.mxu0 0.0
    %302 = vmatprep.subr.mxu0 0.0
    %303 = vmatpush1.msra.mxu0 0.0
    %304 = vmatprep.subr.mxu0 0.0
    %305 = vmatpush1.msra.mxu0 0.0
    %306 = vmatprep.subr.mxu0 0.0
    %307 = vmatpush1.msra.mxu0 0.0
    %308 = vmatprep.subr.mxu0 0.0
    %309 = vmatpush1.msra.mxu0 0.0
    %310 = vmatprep.subr.mxu0 0.0
    %311 = vmatpush1.msra.mxu0 0.0
    %312 = vmatprep.subr.mxu0 0.0
    %313 = vmatpush1.msra.mxu0 0.0
    %314 = vmatprep.subr.mxu0 0.0
    %315 = vmatpush1.msra.mxu0 0.0
    %316 = vmatprep.subr.mxu0 0.0
    %317 = vmatpush1.msra.mxu0 %v99
    %318 = vmatprep.subr.mxu0 0.0
    %319 = vmatpush1.msra.mxu0 %v98
    %320 = vmatprep.subr.mxu0 0.0
    %321 = vmatpush1.msra.mxu0 %v97
    %322 = vmatprep.subr.mxu0 0.0
    %323 = vmatpush1.msra.mxu0 %v96
    %324 = vmatprep.subr.mxu0 0.0
    %325 = vmatpush1.msra.mxu0 %v95
    %326 = vmatprep.subr.mxu0 0.0
    %327 = vmatpush1.msra.mxu0 %v94
    %328 = vmatprep.subr.mxu0 0.0
    %329 = vmatpush1.msra.mxu0 %v93
    %330 = vmatprep.subr.mxu0 0.0
    %331 = vmatpush1.msra.mxu0 %v92
    %332 = vmatprep.subr.mxu0 0.0
    %333 = vmatpush2.msra.mxu0 0.0
    %334 = vmatprep.subr.mxu0 0.0
    %335 = vmatpush2.msra.mxu0 0.0
    %336 = vmatprep.subr.mxu0 0.0
    %337 = vmatpush2.msra.mxu0 0.0
    %338 = vmatprep.subr.mxu0 0.0
    %339 = vmatpush2.msra.mxu0 0.0
    %340 = vmatprep.subr.mxu0 0.0
    %341 = vmatpush2.msra.mxu0 0.0
    %342 = vmatprep.subr.mxu0 0.0
    %343 = vmatpush2.msra.mxu0 0.0
    %344 = vmatprep.subr.mxu0 0.0
    %345 = vmatpush2.msra.mxu0 0.0
    %346 = vmatprep.subr.mxu0 0.0
    %347 = vmatpush2.msra.mxu0 0.0
    %348 = vmatprep.subr.mxu0 0.0
    %349 = vmatpush2.msra.mxu0 0.0
    %350 = vmatprep.subr.mxu0 0.0
    %351 = vmatpush2.msra.mxu0 0.0
    %352 = vmatprep.subr.mxu0 0.0
    %353 = vmatpush2.msra.mxu0 0.0
    %354 = vmatprep.subr.mxu0 0.0
    %355 = vmatpush2.msra.mxu0 0.0
    %356 = vmatprep.subr.mxu0 0.0
    %357 = vmatpush2.msra.mxu0 0.0
    %358 = vmatprep.subr.mxu0 0.0
    %359 = vmatpush2.msra.mxu0 0.0
    %360 = vmatprep.subr.mxu0 0.0
    %361 = vmatpush2.msra.mxu0 0.0
    %362 = vmatprep.subr.mxu0 0.0
    %363 = vmatpush2.msra.mxu0 0.0
    %364 = vmatprep.mubr.f32.mxu0 0.0
    %365 = vmatmul.mubr.f32.gmra.mxu0 %v109
    %v366 = vpop.f32.mrf.mxu0
    %v367 = vadd.f32 %v105, %v366
    %v368 = vpop.f32.mrf.mxu0
    %369 = vmatprep.mubr.f32.mxu0 0.0
    %370 = vmatmul.mubr.f32.gmra.mxu0 %v112
    %v371 = vpop.f32.mrf.mxu0
    %v372 = vadd.f32 %v105, %v371
    %v373 = vpop.f32.mrf.mxu0
    %374 = vmatprep.mubr.f32.mxu0 0.0
    %375 = vmatmul.mubr.f32.gmra.mxu0 %v115
    %v376 = vpop.f32.mrf.mxu0
    %v377 = vadd.f32 %v105, %v376
    %v378 = vpop.f32.mrf.mxu0
    %379 = vmatprep.mubr.f32.mxu0 0.0
    %380 = vmatmul.mubr.f32.gmra.mxu0 %v118
    %v381 = vpop.f32.mrf.mxu0
    %v382 = vadd.f32 %v105, %v381
    %v383 = vpop.f32.mrf.mxu0
    %384 = vmatprep.mubr.f32.mxu0 0.0
    %385 = vmatmul.mubr.f32.gmra.mxu0 %v121
    %v386 = vpop.f32.mrf.mxu0
    %v387 = vadd.f32 %v105, %v386
    %v388 = vpop.f32.mrf.mxu0
    %389 = vmatprep.mubr.f32.mxu0 0.0
    %390 = vmatmul.mubr.f32.gmra.mxu0 %v124
    %v391 = vpop.f32.mrf.mxu0
    %v392 = vadd.f32 %v105, %v391
    %v393 = vpop.f32.mrf.mxu0
    %394 = vmatprep.mubr.f32.mxu0 0.0
    %395 = vmatmul.mubr.f32.gmra.mxu0 %v127
    %v396 = vpop.f32.mrf.mxu0
    %v397 = vadd.f32 %v105, %v396
    %v398 = vpop.f32.mrf.mxu0
    %399 = vmatprep.mubr.f32.mxu0 0.0
    %400 = vmatmul.mubr.f32.gmra.mxu0 %v130
    %v401 = vpop.f32.mrf.mxu0
    %v402 = vadd.f32 %v105, %v401
    %v403 = vpop.f32.mrf.mxu0
    %404 = vmatprep.mubr.f32.mxu0 0.0
    %405 = vmatmul.mubr.f32.gmra.mxu0 %v133
    %v406 = vpop.f32.mrf.mxu0
    %v407 = vadd.f32 %v105, %v406
    %v408 = vpop.f32.mrf.mxu0
    %409 = vmatprep.mubr.f32.mxu0 0.0
    %410 = vmatmul.mubr.f32.gmra.mxu0 %v136
    %v411 = vpop.f32.mrf.mxu0
    %v412 = vadd.f32 %v105, %v411
    %v413 = vpop.f32.mrf.mxu0
    %414 = vmatprep.mubr.f32.mxu0 0.0
    %415 = vmatmul.mubr.f32.gmra.mxu0 %v139
    %v416 = vpop.f32.mrf.mxu0
    %v417 = vadd.f32 %v105, %v416
    %v418 = vpop.f32.mrf.mxu0
    %419 = vmatprep.mubr.f32.mxu0 0.0
    %420 = vmatmul.mubr.f32.gmra.mxu0 %v142
    %v421 = vpop.f32.mrf.mxu0
    %v422 = vadd.f32 %v105, %v421
    %v423 = vpop.f32.mrf.mxu0
    %424 = vmatprep.mubr.f32.mxu0 0.0
    %425 = vmatmul.mubr.f32.gmra.mxu0 %v145
    %v426 = vpop.f32.mrf.mxu0
    %v427 = vadd.f32 %v105, %v426
    %v428 = vpop.f32.mrf.mxu0
    %429 = vmatprep.mubr.f32.mxu0 0.0
    %430 = vmatmul.mubr.f32.gmra.mxu0 %v148
    %v431 = vpop.f32.mrf.mxu0
    %v432 = vadd.f32 %v105, %v431
    %v433 = vpop.f32.mrf.mxu0
    %434 = vmatprep.mubr.f32.mxu0 0.0
    %435 = vmatmul.mubr.f32.gmra.mxu0 %v151
    %v436 = vpop.f32.mrf.mxu0
    %v437 = vadd.f32 %v105, %v436
    %v438 = vpop.f32.mrf.mxu0
    %439 = vmatprep.mubr.f32.mxu0 0.0
    %440 = vmatmul.mubr.f32.gmra.mxu0 %v154
    %v441 = vpop.f32.mrf.mxu0
    %v442 = vadd.f32 %v105, %v441
    %v443 = vpop.f32.mrf.mxu0
    %444 = vmatprep.mubr.f32.mxu0 0.0
    %445 = vmatmul.mubr.f32.gmra.mxu0 %v157
    %v446 = vpop.f32.mrf.mxu0
    %v447 = vadd.f32 %v105, %v446
    %v448 = vpop.f32.mrf.mxu0
    %449 = vmatprep.mubr.f32.mxu0 0.0
    %450 = vmatmul.mubr.f32.gmra.mxu0 %v160
    %v451 = vpop.f32.mrf.mxu0
    %v452 = vadd.f32 %v105, %v451
    %v453 = vpop.f32.mrf.mxu0
    %454 = vmatprep.mubr.f32.mxu0 0.0
    %455 = vmatmul.mubr.f32.gmra.mxu0 %v163
    %v456 = vpop.f32.mrf.mxu0
    %v457 = vadd.f32 %v105, %v456
    %v458 = vpop.f32.mrf.mxu0
    %459 = vmatprep.mubr.f32.mxu0 0.0
    %460 = vmatmul.mubr.f32.gmra.mxu0 %v166
    %v461 = vpop.f32.mrf.mxu0
    %v462 = vadd.f32 %v105, %v461
    %v463 = vpop.f32.mrf.mxu0
    %464 = vmatprep.mubr.f32.mxu0 0.0
    %465 = vmatmul.mubr.f32.gmra.mxu0 %v169
    %v466 = vpop.f32.mrf.mxu0
    %v467 = vadd.f32 %v105, %v466
    %v468 = vpop.f32.mrf.mxu0
    %469 = vmatprep.mubr.f32.mxu0 0.0
    %470 = vmatmul.mubr.f32.gmra.mxu0 %v172
    %v471 = vpop.f32.mrf.mxu0
    %v472 = vadd.f32 %v105, %v471
    %v473 = vpop.f32.mrf.mxu0
    %474 = vmatprep.mubr.f32.mxu0 0.0
    %475 = vmatmul.mubr.f32.gmra.mxu0 %v175
    %v476 = vpop.f32.mrf.mxu0
    %v477 = vadd.f32 %v105, %v476
    %v478 = vpop.f32.mrf.mxu0
    %479 = vmatprep.mubr.f32.mxu0 0.0
    %480 = vmatmul.mubr.f32.gmra.mxu0 %v178
    %v481 = vpop.f32.mrf.mxu0
    %v482 = vadd.f32 %v105, %v481
    %v483 = vpop.f32.mrf.mxu0
    %484 = vmatprep.mubr.f32.mxu0 0.0
    %485 = vmatmul.mubr.f32.gmra.mxu0 %v181
    %v486 = vpop.f32.mrf.mxu0
    %v487 = vadd.f32 %v105, %v486
    %v488 = vpop.f32.mrf.mxu0
    %489 = vmatprep.mubr.f32.mxu0 0.0
    %490 = vmatmul.mubr.f32.gmra.mxu0 %v184
    %v491 = vpop.f32.mrf.mxu0
    %v492 = vadd.f32 %v105, %v491
    %v493 = vpop.f32.mrf.mxu0
    %494 = vmatprep.mubr.f32.mxu0 0.0
    %495 = vmatmul.mubr.f32.gmra.mxu0 %v187
    %v496 = vpop.f32.mrf.mxu0
    %v497 = vadd.f32 %v105, %v496
    %v498 = vpop.f32.mrf.mxu0
    %499 = vmatprep.mubr.f32.mxu0 0.0
    %500 = vmatmul.mubr.f32.gmra.mxu0 %v190
    %v501 = vpop.f32.mrf.mxu0
    %v502 = vadd.f32 %v105, %v501
    %v503 = vpop.f32.mrf.mxu0
    %504 = vmatprep.mubr.f32.mxu0 0.0
    %505 = vmatmul.mubr.f32.gmra.mxu0 %v193
    %v506 = vpop.f32.mrf.mxu0
    %v507 = vadd.f32 %v105, %v506
    %v508 = vpop.f32.mrf.mxu0
    %509 = vmatprep.mubr.f32.mxu0 0.0
    %510 = vmatmul.mubr.f32.gmra.mxu0 %v196
    %v511 = vpop.f32.mrf.mxu0
    %v512 = vadd.f32 %v105, %v511
    %v513 = vpop.f32.mrf.mxu0
    %514 = vmatprep.mubr.f32.mxu0 0.0
    %515 = vmatmul.mubr.f32.gmra.mxu0 %v199
    %v516 = vpop.f32.mrf.mxu0
    %v517 = vadd.f32 %v105, %v516
    %v518 = vpop.f32.mrf.mxu0
    %519 = vmatprep.mubr.f32.mxu0 0.0
    %520 = vmatmul.mubr.f32.gmra.mxu0 %v202
    %v521 = vpop.f32.mrf.mxu0
    %v522 = vadd.f32 %v105, %v521
    %v523 = vpop.f32.mrf.mxu0
    %524 = vmatprep.mubr.f32.mxu0 0.0
    %525 = vmatmul.mubr.f32.gmra.mxu0 %v205
    %v526 = vpop.f32.mrf.mxu0
    %v527 = vadd.f32 %v105, %v526
    %v528 = vpop.f32.mrf.mxu0
    %529 = vmatprep.mubr.f32.mxu0 0.0
    %530 = vmatmul.mubr.f32.gmra.mxu0 %v208
    %v531 = vpop.f32.mrf.mxu0
    %v532 = vadd.f32 %v105, %v531
    %v533 = vpop.f32.mrf.mxu0
    %534 = vmatprep.mubr.f32.mxu0 0.0
    %535 = vmatmul.mubr.f32.gmra.mxu0 %v211
    %v536 = vpop.f32.mrf.mxu0
    %v537 = vadd.f32 %v105, %v536
    %v538 = vpop.f32.mrf.mxu0
    %539 = vmatprep.mubr.f32.mxu0 0.0
    %540 = vmatmul.mubr.f32.gmra.mxu0 %v214
    %v541 = vpop.f32.mrf.mxu0
    %v542 = vadd.f32 %v105, %v541
    %v543 = vpop.f32.mrf.mxu0
    %544 = vmatprep.mubr.f32.mxu0 0.0
    %545 = vmatmul.mubr.f32.gmra.mxu0 %v217
    %v546 = vpop.f32.mrf.mxu0
    %v547 = vadd.f32 %v105, %v546
    %v548 = vpop.f32.mrf.mxu0
    %549 = vmatprep.mubr.f32.mxu0 0.0
    %550 = vmatmul.mubr.f32.gmra.mxu0 %v220
    %v551 = vpop.f32.mrf.mxu0
    %v552 = vadd.f32 %v105, %v551
    %v553 = vpop.f32.mrf.mxu0
    %554 = vmatprep.mubr.f32.mxu0 0.0
    %555 = vmatmul.mubr.f32.gmra.mxu0 %v223
    %v556 = vpop.f32.mrf.mxu0
    %v557 = vadd.f32 %v105, %v556
    %v558 = vpop.f32.mrf.mxu0
    %559 = vmatprep.mubr.f32.mxu0 0.0
    %560 = vmatmul.mubr.f32.gmra.mxu0 %v226
    %v561 = vpop.f32.mrf.mxu0
    %v562 = vadd.f32 %v105, %v561
    %v563 = vpop.f32.mrf.mxu0
    %564 = vmatprep.mubr.f32.mxu0 0.0
    %565 = vmatmul.mubr.f32.gmra.mxu0 %v229
    %v566 = vpop.f32.mrf.mxu0
    %v567 = vadd.f32 %v105, %v566
    %v568 = vpop.f32.mrf.mxu0
    %569 = vmatprep.mubr.f32.mxu0 0.0
    %570 = vmatmul.mubr.f32.gmra.mxu0 %v232
    %v571 = vpop.f32.mrf.mxu0
    %v572 = vadd.f32 %v105, %v571
    %v573 = vpop.f32.mrf.mxu0
    %574 = vmatprep.mubr.f32.mxu0 0.0
    %575 = vmatmul.mubr.f32.gmra.mxu0 %v235
    %v576 = vpop.f32.mrf.mxu0
    %v577 = vadd.f32 %v105, %v576
    %v578 = vpop.f32.mrf.mxu0
    %579 = vmatprep.mubr.f32.mxu0 0.0
    %580 = vmatmul.mubr.f32.gmra.mxu0 %v238
    %v581 = vpop.f32.mrf.mxu0
    %v582 = vadd.f32 %v105, %v581
    %v583 = vpop.f32.mrf.mxu0
    %584 = vmatprep.mubr.f32.mxu0 0.0
    %585 = vmatmul.mubr.f32.gmra.mxu0 %v241
    %v586 = vpop.f32.mrf.mxu0
    %v587 = vadd.f32 %v105, %v586
    %v588 = vpop.f32.mrf.mxu0
    %589 = vmatprep.mubr.f32.mxu0 0.0
    %590 = vmatmul.mubr.f32.gmra.mxu0 %v244
    %v591 = vpop.f32.mrf.mxu0
    %v592 = vadd.f32 %v105, %v591
    %v593 = vpop.f32.mrf.mxu0
    %594 = vmatprep.mubr.f32.mxu0 0.0
    %595 = vmatmul.mubr.f32.gmra.mxu0 %v247
    %v596 = vpop.f32.mrf.mxu0
    %v597 = vadd.f32 %v105, %v596
    %v598 = vpop.f32.mrf.mxu0
    %599 = vmatprep.mubr.f32.mxu0 0.0
    %600 = vmatmul.mubr.f32.gmra.mxu0 %v250
    %v601 = vpop.f32.mrf.mxu0
    %v602 = vadd.f32 %v105, %v601
    %v603 = vpop.f32.mrf.mxu0
    %604 = vmatprep.mubr.f32.mxu0 0.0
    %605 = vmatmul.mubr.f32.gmra.mxu0 %v253
    %v606 = vpop.f32.mrf.mxu0
    %v607 = vadd.f32 %v105, %v606
    %v608 = vpop.f32.mrf.mxu0
    %609 = vmatprep.mubr.f32.mxu0 0.0
    %610 = vmatmul.mubr.f32.gmra.mxu0 %v256
    %v611 = vpop.f32.mrf.mxu0
    %v612 = vadd.f32 %v105, %v611
    %v613 = vpop.f32.mrf.mxu0
    %614 = vmatprep.mubr.f32.mxu0 0.0
    %615 = vmatmul.mubr.f32.gmra.mxu0 %v259
    %v616 = vpop.f32.mrf.mxu0
    %v617 = vadd.f32 %v105, %v616
    %v618 = vpop.f32.mrf.mxu0
    %619 = vmatprep.mubr.f32.mxu0 0.0
    %620 = vmatmul.mubr.f32.gmra.mxu0 %v262
    %v621 = vpop.f32.mrf.mxu0
    %v622 = vadd.f32 %v105, %v621
    %v623 = vpop.f32.mrf.mxu0
    %624 = vmatprep.mubr.f32.mxu0 0.0
    %625 = vmatmul.mubr.f32.gmra.mxu0 %v265
    %v626 = vpop.f32.mrf.mxu0
    %v627 = vadd.f32 %v105, %v626
    %v628 = vpop.f32.mrf.mxu0
    %629 = vmatprep.mubr.f32.mxu0 0.0
    %630 = vmatmul.mubr.f32.gmra.mxu0 %v268
    %v631 = vpop.f32.mrf.mxu0
    %v632 = vadd.f32 %v105, %v631
    %v633 = vpop.f32.mrf.mxu0
    %634 = vmatprep.mubr.f32.mxu0 0.0
    %635 = vmatmul.mubr.f32.gmra.mxu0 %v271
    %v636 = vpop.f32.mrf.mxu0
    %v637 = vadd.f32 %v105, %v636
    %v638 = vpop.f32.mrf.mxu0
    %639 = vmatprep.mubr.f32.mxu0 0.0
    %640 = vmatmul.mubr.f32.gmra.mxu0 %v274
    %v641 = vpop.f32.mrf.mxu0
    %v642 = vadd.f32 %v105, %v641
    %v643 = vpop.f32.mrf.mxu0
    %644 = vmatprep.mubr.f32.mxu0 0.0
    %645 = vmatmul.mubr.f32.gmra.mxu0 %v277
    %v646 = vpop.f32.mrf.mxu0
    %v647 = vadd.f32 %v105, %v646
    %v648 = vpop.f32.mrf.mxu0
    %649 = vmatprep.mubr.f32.mxu0 0.0
    %650 = vmatmul.mubr.f32.gmra.mxu0 %v280
    %v651 = vpop.f32.mrf.mxu0
    %v652 = vadd.f32 %v105, %v651
    %v653 = vpop.f32.mrf.mxu0
    %654 = vmatprep.mubr.f32.mxu0 0.0
    %655 = vmatmul.mubr.f32.gmra.mxu0 %v283
    %v656 = vpop.f32.mrf.mxu0
    %v657 = vadd.f32 %v105, %v656
    %v658 = vpop.f32.mrf.mxu0
    %659 = vmatprep.mubr.f32.mxu0 0.0
    %660 = vmatmul.mubr.f32.gmra.mxu0 %v286
    %v661 = vpop.f32.mrf.mxu0
    %v662 = vadd.f32 %v105, %v661
    %v663 = vpop.f32.mrf.mxu0
    %664 = vmatprep.mubr.f32.mxu0 0.0
    %665 = vmatmul.mubr.f32.gmra.mxu0 %v289
    %v666 = vpop.f32.mrf.mxu0
    %v667 = vadd.f32 %v105, %v666
    %v668 = vpop.f32.mrf.mxu0
    %669 = vmatprep.mubr.f32.mxu0 0.0
    %670 = vmatmul.mubr.f32.gmra.mxu0 %v292
    %v671 = vpop.f32.mrf.mxu0
    %v672 = vadd.f32 %v105, %v671
    %v673 = vpop.f32.mrf.mxu0
    %674 = vmatprep.mubr.f32.mxu0 0.0
    %675 = vmatmul.mubr.f32.gmra.mxu0 %v295
    %v676 = vpop.f32.mrf.mxu0
    %v677 = vadd.f32 %v105, %v676
    %v678 = vpop.f32.mrf.mxu0
    %679 = vmatprep.mubr.f32.mxu0 0.0
    %680 = vmatmul.mubr.f32.gmra.mxu0 %v298
    %v681 = vpop.f32.mrf.mxu0
    %v682 = vadd.f32 %v105, %v681
    %v683 = vpop.f32.mrf.mxu0
    %684 = vdwg.mxu0
    %vm685 = vcmp.gt.f32.partialorder %v367, 0.0
    %vm686 = vcmp.gt.f32.partialorder %v372, 0.0
    %vm687 = vcmp.gt.f32.partialorder %v377, 0.0
    %vm688 = vcmp.gt.f32.partialorder %v382, 0.0
    %vm689 = vcmp.gt.f32.partialorder %v387, 0.0
    %vm690 = vcmp.gt.f32.partialorder %v392, 0.0
    %vm691 = vcmp.gt.f32.partialorder %v397, 0.0
    %vm692 = vcmp.gt.f32.partialorder %v402, 0.0
    %vm693 = vcmp.gt.f32.partialorder %v407, 0.0
    %vm694 = vcmp.gt.f32.partialorder %v412, 0.0
    %vm695 = vcmp.gt.f32.partialorder %v417, 0.0
    %vm696 = vcmp.gt.f32.partialorder %v422, 0.0
    %vm697 = vcmp.gt.f32.partialorder %v427, 0.0
    %vm698 = vcmp.gt.f32.partialorder %v432, 0.0
    %vm699 = vcmp.gt.f32.partialorder %v437, 0.0
    %vm700 = vcmp.gt.f32.partialorder %v442, 0.0
    %vm701 = vcmp.gt.f32.partialorder %v447, 0.0
    %vm702 = vcmp.gt.f32.partialorder %v452, 0.0
    %vm703 = vcmp.gt.f32.partialorder %v457, 0.0
    %vm704 = vcmp.gt.f32.partialorder %v462, 0.0
    %vm705 = vcmp.gt.f32.partialorder %v467, 0.0
    %vm706 = vcmp.gt.f32.partialorder %v472, 0.0
    %vm707 = vcmp.gt.f32.partialorder %v477, 0.0
    %vm708 = vcmp.gt.f32.partialorder %v482, 0.0
    %vm709 = vcmp.gt.f32.partialorder %v487, 0.0
    %vm710 = vcmp.gt.f32.partialorder %v492, 0.0
    %vm711 = vcmp.gt.f32.partialorder %v497, 0.0
    %vm712 = vcmp.gt.f32.partialorder %v502, 0.0
    %vm713 = vcmp.gt.f32.partialorder %v507, 0.0
    %vm714 = vcmp.gt.f32.partialorder %v512, 0.0
    %vm715 = vcmp.gt.f32.partialorder %v517, 0.0
    %vm716 = vcmp.gt.f32.partialorder %v522, 0.0
    %vm717 = vcmp.gt.f32.partialorder %v527, 0.0
    %vm718 = vcmp.gt.f32.partialorder %v532, 0.0
    %vm719 = vcmp.gt.f32.partialorder %v537, 0.0
    %vm720 = vcmp.gt.f32.partialorder %v542, 0.0
    %vm721 = vcmp.gt.f32.partialorder %v547, 0.0
    %vm722 = vcmp.gt.f32.partialorder %v552, 0.0
    %vm723 = vcmp.gt.f32.partialorder %v557, 0.0
    %vm724 = vcmp.gt.f32.partialorder %v562, 0.0
    %vm725 = vcmp.gt.f32.partialorder %v567, 0.0
    %vm726 = vcmp.gt.f32.partialorder %v572, 0.0
    %vm727 = vcmp.gt.f32.partialorder %v577, 0.0
    %vm728 = vcmp.gt.f32.partialorder %v582, 0.0
    %vm729 = vcmp.gt.f32.partialorder %v587, 0.0
    %vm730 = vcmp.gt.f32.partialorder %v592, 0.0
    %vm731 = vcmp.gt.f32.partialorder %v597, 0.0
    %vm732 = vcmp.gt.f32.partialorder %v602, 0.0
    %vm733 = vcmp.gt.f32.partialorder %v607, 0.0
    %vm734 = vcmp.gt.f32.partialorder %v612, 0.0
    %vm735 = vcmp.gt.f32.partialorder %v617, 0.0
    %vm736 = vcmp.gt.f32.partialorder %v622, 0.0
    %vm737 = vcmp.gt.f32.partialorder %v627, 0.0
    %vm738 = vcmp.gt.f32.partialorder %v632, 0.0
    %vm739 = vcmp.gt.f32.partialorder %v637, 0.0
    %vm740 = vcmp.gt.f32.partialorder %v642, 0.0
    %vm741 = vcmp.gt.f32.partialorder %v647, 0.0
    %vm742 = vcmp.gt.f32.partialorder %v652, 0.0
    %vm743 = vcmp.gt.f32.partialorder %v657, 0.0
    %vm744 = vcmp.gt.f32.partialorder %v662, 0.0
    %vm745 = vcmp.gt.f32.partialorder %v667, 0.0
    %vm746 = vcmp.gt.f32.partialorder %v672, 0.0
    %vm747 = vcmp.gt.f32.partialorder %v677, 0.0
    %vm748 = vcmp.gt.f32.partialorder %v682, 0.0
    %v749 = vmul.f32 %v367, 0.2
    %v750 = vmul.f32 %v372, 0.2
    %v751 = vmul.f32 %v377, 0.2
    %v752 = vmul.f32 %v382, 0.2
    %v753 = vmul.f32 %v387, 0.2
    %v754 = vmul.f32 %v392, 0.2
    %v755 = vmul.f32 %v397, 0.2
    %v756 = vmul.f32 %v402, 0.2
    %v757 = vmul.f32 %v407, 0.2
    %v758 = vmul.f32 %v412, 0.2
    %v759 = vmul.f32 %v417, 0.2
    %v760 = vmul.f32 %v422, 0.2
    %v761 = vmul.f32 %v427, 0.2
    %v762 = vmul.f32 %v432, 0.2
    %v763 = vmul.f32 %v437, 0.2
    %v764 = vmul.f32 %v442, 0.2
    %v765 = vmul.f32 %v447, 0.2
    %v766 = vmul.f32 %v452, 0.2
    %v767 = vmul.f32 %v457, 0.2
    %v768 = vmul.f32 %v462, 0.2
    %v769 = vmul.f32 %v467, 0.2
    %v770 = vmul.f32 %v472, 0.2
    %v771 = vmul.f32 %v477, 0.2
    %v772 = vmul.f32 %v482, 0.2
    %v773 = vmul.f32 %v487, 0.2
    %v774 = vmul.f32 %v492, 0.2
    %v775 = vmul.f32 %v497, 0.2
    %v776 = vmul.f32 %v502, 0.2
    %v777 = vmul.f32 %v507, 0.2
    %v778 = vmul.f32 %v512, 0.2
    %v779 = vmul.f32 %v517, 0.2
    %v780 = vmul.f32 %v522, 0.2
    %v781 = vmul.f32 %v527, 0.2
    %v782 = vmul.f32 %v532, 0.2
    %v783 = vmul.f32 %v537, 0.2
    %v784 = vmul.f32 %v542, 0.2
    %v785 = vmul.f32 %v547, 0.2
    %v786 = vmul.f32 %v552, 0.2
    %v787 = vmul.f32 %v557, 0.2
    %v788 = vmul.f32 %v562, 0.2
    %v789 = vmul.f32 %v567, 0.2
    %v790 = vmul.f32 %v572, 0.2
    %v791 = vmul.f32 %v577, 0.2
    %v792 = vmul.f32 %v582, 0.2
    %v793 = vmul.f32 %v587, 0.2
    %v794 = vmul.f32 %v592, 0.2
    %v795 = vmul.f32 %v597, 0.2
    %v796 = vmul.f32 %v602, 0.2
    %v797 = vmul.f32 %v607, 0.2
    %v798 = vmul.f32 %v612, 0.2
    %v799 = vmul.f32 %v617, 0.2
    %v800 = vmul.f32 %v622, 0.2
    %v801 = vmul.f32 %v627, 0.2
    %v802 = vmul.f32 %v632, 0.2
    %v803 = vmul.f32 %v637, 0.2
    %v804 = vmul.f32 %v642, 0.2
    %v805 = vmul.f32 %v647, 0.2
    %v806 = vmul.f32 %v652, 0.2
    %v807 = vmul.f32 %v657, 0.2
    %v808 = vmul.f32 %v662, 0.2
    %v809 = vmul.f32 %v667, 0.2
    %v810 = vmul.f32 %v672, 0.2
    %v811 = vmul.f32 %v677, 0.2
    %v812 = vmul.f32 %v682, 0.2
    %v813 = vsel %vm685, %v367, %v749
    %v814 = vsel %vm686, %v372, %v750
    %v815 = vsel %vm687, %v377, %v751
    %v816 = vsel %vm688, %v382, %v752
    %v817 = vsel %vm689, %v387, %v753
    %v818 = vsel %vm690, %v392, %v754
    %v819 = vsel %vm691, %v397, %v755
    %v820 = vsel %vm692, %v402, %v756
    %v821 = vsel %vm693, %v407, %v757
    %v822 = vsel %vm694, %v412, %v758
    %v823 = vsel %vm695, %v417, %v759
    %v824 = vsel %vm696, %v422, %v760
    %v825 = vsel %vm697, %v427, %v761
    %v826 = vsel %vm698, %v432, %v762
    %v827 = vsel %vm699, %v437, %v763
    %v828 = vsel %vm700, %v442, %v764
    %v829 = vsel %vm701, %v447, %v765
    %v830 = vsel %vm702, %v452, %v766
    %v831 = vsel %vm703, %v457, %v767
    %v832 = vsel %vm704, %v462, %v768
    %v833 = vsel %vm705, %v467, %v769
    %v834 = vsel %vm706, %v472, %v770
    %v835 = vsel %vm707, %v477, %v771
    %v836 = vsel %vm708, %v482, %v772
    %v837 = vsel %vm709, %v487, %v773
    %v838 = vsel %vm710, %v492, %v774
    %v839 = vsel %vm711, %v497, %v775
    %v840 = vsel %vm712, %v502, %v776
    %v841 = vsel %vm713, %v507, %v777
    %v842 = vsel %vm714, %v512, %v778
    %v843 = vsel %vm715, %v517, %v779
    %v844 = vsel %vm716, %v522, %v780
    %v845 = vsel %vm717, %v527, %v781
    %v846 = vsel %vm718, %v532, %v782
    %v847 = vsel %vm719, %v537, %v783
    %v848 = vsel %vm720, %v542, %v784
    %v849 = vsel %vm721, %v547, %v785
    %v850 = vsel %vm722, %v552, %v786
    %v851 = vsel %vm723, %v557, %v787
    %v852 = vsel %vm724, %v562, %v788
    %v853 = vsel %vm725, %v567, %v789
    %v854 = vsel %vm726, %v572, %v790
    %v855 = vsel %vm727, %v577, %v791
    %v856 = vsel %vm728, %v582, %v792
    %v857 = vsel %vm729, %v587, %v793
    %v858 = vsel %vm730, %v592, %v794
    %v859 = vsel %vm731, %v597, %v795
    %v860 = vsel %vm732, %v602, %v796
    %v861 = vsel %vm733, %v607, %v797
    %v862 = vsel %vm734, %v612, %v798
    %v863 = vsel %vm735, %v617, %v799
    %v864 = vsel %vm736, %v622, %v800
    %v865 = vsel %vm737, %v627, %v801
    %v866 = vsel %vm738, %v632, %v802
    %v867 = vsel %vm739, %v637, %v803
    %v868 = vsel %vm740, %v642, %v804
    %v869 = vsel %vm741, %v647, %v805
    %v870 = vsel %vm742, %v652, %v806
    %v871 = vsel %vm743, %v657, %v807
    %v872 = vsel %vm744, %v662, %v808
    %v873 = vsel %vm745, %v667, %v809
    %v874 = vsel %vm746, %v672, %v810
    %v875 = vsel %vm747, %v677, %v811
    %v876 = vsel %vm748, %v682, %v812
    %v877 = vld [vmem:[%s3] sm:$0xff]
    %v878 = vld [vmem:[%s3 + $0x8] sm:$0xff]
    %v879 = vld [vmem:[%s3 + $0x10] sm:$0xff]
    %v880 = vld [vmem:[%s3 + $0x18] sm:$0xff]
    %v881 = vld [vmem:[%s3 + $0x20] sm:$0xff]
    %v882 = vld [vmem:[%s3 + $0x28] sm:$0xff]
    %v883 = vld [vmem:[%s3 + $0x30] sm:$0xff]
    %v884 = vld [vmem:[%s3 + $0x38] sm:$0xff]
    %v885 = vld [vmem:[%s3 + $0x40] sm:$0xff]
    %v886 = vld [vmem:[%s3 + $0x48] sm:$0xff]
    %v887 = vld [vmem:[%s3 + $0x50] sm:$0xff]
    %v888 = vld [vmem:[%s3 + $0x58] sm:$0xff]
    %v889 = vld [vmem:[%s3 + $0x60] sm:$0xff]
    %v890 = vld [vmem:[%s3 + $0x68] sm:$0xff]
    %v891 = vld [vmem:[%s3 + $0x70] sm:$0xff]
    %v892 = vld [vmem:[%s3 + $0x78] sm:$0xff]
    %v893 = vld [vmem:[%s4] sm:$0x1]
    %v895 = vlaneseq
    %v896 = vshrl.u32 %v895, 7
    %v897 = vsub.s32 0, %v896
    %v898 = vrot.slane %v893, %v897
    %900 = vmatprep.subr.mxu0 0.0
    %901 = vmatpush1.msra.mxu0 %v892
    %902 = vmatprep.subr.mxu0 0.0
    %903 = vmatpush1.msra.mxu0 %v891
    %904 = vmatprep.subr.mxu0 0.0
    %905 = vmatpush1.msra.mxu0 %v890
    %906 = vmatprep.subr.mxu0 0.0
    %907 = vmatpush1.msra.mxu0 %v889
    %908 = vmatprep.subr.mxu0 0.0
    %909 = vmatpush1.msra.mxu0 %v888
    %910 = vmatprep.subr.mxu0 0.0
    %911 = vmatpush1.msra.mxu0 %v887
    %912 = vmatprep.subr.mxu0 0.0
    %913 = vmatpush1.msra.mxu0 %v886
    %914 = vmatprep.subr.mxu0 0.0
    %915 = vmatpush1.msra.mxu0 %v885
    %916 = vmatprep.subr.mxu0 0.0
    %917 = vmatpush1.msra.mxu0 %v884
    %918 = vmatprep.subr.mxu0 0.0
    %919 = vmatpush1.msra.mxu0 %v883
    %920 = vmatprep.subr.mxu0 0.0
    %921 = vmatpush1.msra.mxu0 %v882
    %922 = vmatprep.subr.mxu0 0.0
    %923 = vmatpush1.msra.mxu0 %v881
    %924 = vmatprep.subr.mxu0 0.0
    %925 = vmatpush1.msra.mxu0 %v880
    %926 = vmatprep.subr.mxu0 0.0
    %927 = vmatpush1.msra.mxu0 %v879
    %928 = vmatprep.subr.mxu0 0.0
    %929 = vmatpush1.msra.mxu0 %v878
    %930 = vmatprep.subr.mxu0 0.0
    %931 = vmatpush1.msra.mxu0 %v877
    %932 = vmatprep.subr.mxu0 0.0
    %933 = vmatpush2.msra.mxu0 0.0
    %934 = vmatprep.subr.mxu0 0.0
    %935 = vmatpush2.msra.mxu0 0.0
    %936 = vmatprep.subr.mxu0 0.0
    %937 = vmatpush2.msra.mxu0 0.0
    %938 = vmatprep.subr.mxu0 0.0
    %939 = vmatpush2.msra.mxu0 0.0
    %940 = vmatprep.subr.mxu0 0.0
    %941 = vmatpush2.msra.mxu0 0.0
    %942 = vmatprep.subr.mxu0 0.0
    %943 = vmatpush2.msra.mxu0 0.0
    %944 = vmatprep.subr.mxu0 0.0
    %945 = vmatpush2.msra.mxu0 0.0
    %946 = vmatprep.subr.mxu0 0.0
    %947 = vmatpush2.msra.mxu0 0.0
    %948 = vmatprep.subr.mxu0 0.0
    %949 = vmatpush2.msra.mxu0 0.0
    %950 = vmatprep.subr.mxu0 0.0
    %951 = vmatpush2.msra.mxu0 0.0
    %952 = vmatprep.subr.mxu0 0.0
    %953 = vmatpush2.msra.mxu0 0.0
    %954 = vmatprep.subr.mxu0 0.0
    %955 = vmatpush2.msra.mxu0 0.0
    %956 = vmatprep.subr.mxu0 0.0
    %957 = vmatpush2.msra.mxu0 0.0
    %958 = vmatprep.subr.mxu0 0.0
    %959 = vmatpush2.msra.mxu0 0.0
    %960 = vmatprep.subr.mxu0 0.0
    %961 = vmatpush2.msra.mxu0 0.0
    %962 = vmatprep.subr.mxu0 0.0
    %963 = vmatpush2.msra.mxu0 0.0
    %964 = vmatprep.mubr.f32.mxu0 0.0
    %965 = vmatmul.mubr.f32.gmra.mxu0 %v813
    %v966 = vpop.f32.mrf.mxu0
    %v967 = vadd.f32 %v898, %v966
    %v968 = vpop.f32.mrf.mxu0
    %969 = vmatprep.mubr.f32.mxu0 0.0
    %970 = vmatmul.mubr.f32.gmra.mxu0 %v814
    %v971 = vpop.f32.mrf.mxu0
    %v972 = vadd.f32 %v898, %v971
    %v973 = vpop.f32.mrf.mxu0
    %974 = vmatprep.mubr.f32.mxu0 0.0
    %975 = vmatmul.mubr.f32.gmra.mxu0 %v815
    %v976 = vpop.f32.mrf.mxu0
    %v977 = vadd.f32 %v898, %v976
    %v978 = vpop.f32.mrf.mxu0
    %979 = vmatprep.mubr.f32.mxu0 0.0
    %980 = vmatmul.mubr.f32.gmra.mxu0 %v816
    %v981 = vpop.f32.mrf.mxu0
    %v982 = vadd.f32 %v898, %v981
    %v983 = vpop.f32.mrf.mxu0
    %984 = vmatprep.mubr.f32.mxu0 0.0
    %985 = vmatmul.mubr.f32.gmra.mxu0 %v817
    %v986 = vpop.f32.mrf.mxu0
    %v987 = vadd.f32 %v898, %v986
    %v988 = vpop.f32.mrf.mxu0
    %989 = vmatprep.mubr.f32.mxu0 0.0
    %990 = vmatmul.mubr.f32.gmra.mxu0 %v818
    %v991 = vpop.f32.mrf.mxu0
    %v992 = vadd.f32 %v898, %v991
    %v993 = vpop.f32.mrf.mxu0
    %994 = vmatprep.mubr.f32.mxu0 0.0
    %995 = vmatmul.mubr.f32.gmra.mxu0 %v819
    %v996 = vpop.f32.mrf.mxu0
    %v997 = vadd.f32 %v898, %v996
    %v998 = vpop.f32.mrf.mxu0
    %999 = vmatprep.mubr.f32.mxu0 0.0
    %1000 = vmatmul.mubr.f32.gmra.mxu0 %v820
    %v1001 = vpop.f32.mrf.mxu0
    %v1002 = vadd.f32 %v898, %v1001
    %v1003 = vpop.f32.mrf.mxu0
    %1004 = vmatprep.mubr.f32.mxu0 0.0
    %1005 = vmatmul.mubr.f32.gmra.mxu0 %v821
    %v1006 = vpop.f32.mrf.mxu0
    %v1007 = vadd.f32 %v898, %v1006
    %v1008 = vpop.f32.mrf.mxu0
    %1009 = vmatprep.mubr.f32.mxu0 0.0
    %1010 = vmatmul.mubr.f32.gmra.mxu0 %v822
    %v1011 = vpop.f32.mrf.mxu0
    %v1012 = vadd.f32 %v898, %v1011
    %v1013 = vpop.f32.mrf.mxu0
    %1014 = vmatprep.mubr.f32.mxu0 0.0
    %1015 = vmatmul.mubr.f32.gmra.mxu0 %v823
    %v1016 = vpop.f32.mrf.mxu0
    %v1017 = vadd.f32 %v898, %v1016
    %v1018 = vpop.f32.mrf.mxu0
    %1019 = vmatprep.mubr.f32.mxu0 0.0
    %1020 = vmatmul.mubr.f32.gmra.mxu0 %v824
    %v1021 = vpop.f32.mrf.mxu0
    %v1022 = vadd.f32 %v898, %v1021
    %v1023 = vpop.f32.mrf.mxu0
    %1024 = vmatprep.mubr.f32.mxu0 0.0
    %1025 = vmatmul.mubr.f32.gmra.mxu0 %v825
    %v1026 = vpop.f32.mrf.mxu0
    %v1027 = vadd.f32 %v898, %v1026
    %v1028 = vpop.f32.mrf.mxu0
    %1029 = vmatprep.mubr.f32.mxu0 0.0
    %1030 = vmatmul.mubr.f32.gmra.mxu0 %v826
    %v1031 = vpop.f32.mrf.mxu0
    %v1032 = vadd.f32 %v898, %v1031
    %v1033 = vpop.f32.mrf.mxu0
    %1034 = vmatprep.mubr.f32.mxu0 0.0
    %1035 = vmatmul.mubr.f32.gmra.mxu0 %v827
    %v1036 = vpop.f32.mrf.mxu0
    %v1037 = vadd.f32 %v898, %v1036
    %v1038 = vpop.f32.mrf.mxu0
    %1039 = vmatprep.mubr.f32.mxu0 0.0
    %1040 = vmatmul.mubr.f32.gmra.mxu0 %v828
    %v1041 = vpop.f32.mrf.mxu0
    %v1042 = vadd.f32 %v898, %v1041
    %v1043 = vpop.f32.mrf.mxu0
    %1044 = vmatprep.mubr.f32.mxu0 0.0
    %1045 = vmatmul.mubr.f32.gmra.mxu0 %v829
    %v1046 = vpop.f32.mrf.mxu0
    %v1047 = vadd.f32 %v898, %v1046
    %v1048 = vpop.f32.mrf.mxu0
    %1049 = vmatprep.mubr.f32.mxu0 0.0
    %1050 = vmatmul.mubr.f32.gmra.mxu0 %v830
    %v1051 = vpop.f32.mrf.mxu0
    %v1052 = vadd.f32 %v898, %v1051
    %v1053 = vpop.f32.mrf.mxu0
    %1054 = vmatprep.mubr.f32.mxu0 0.0
    %1055 = vmatmul.mubr.f32.gmra.mxu0 %v831
    %v1056 = vpop.f32.mrf.mxu0
    %v1057 = vadd.f32 %v898, %v1056
    %v1058 = vpop.f32.mrf.mxu0
    %1059 = vmatprep.mubr.f32.mxu0 0.0
    %1060 = vmatmul.mubr.f32.gmra.mxu0 %v832
    %v1061 = vpop.f32.mrf.mxu0
    %v1062 = vadd.f32 %v898, %v1061
    %v1063 = vpop.f32.mrf.mxu0
    %1064 = vmatprep.mubr.f32.mxu0 0.0
    %1065 = vmatmul.mubr.f32.gmra.mxu0 %v833
    %v1066 = vpop.f32.mrf.mxu0
    %v1067 = vadd.f32 %v898, %v1066
    %v1068 = vpop.f32.mrf.mxu0
    %1069 = vmatprep.mubr.f32.mxu0 0.0
    %1070 = vmatmul.mubr.f32.gmra.mxu0 %v834
    %v1071 = vpop.f32.mrf.mxu0
    %v1072 = vadd.f32 %v898, %v1071
    %v1073 = vpop.f32.mrf.mxu0
    %1074 = vmatprep.mubr.f32.mxu0 0.0
    %1075 = vmatmul.mubr.f32.gmra.mxu0 %v835
    %v1076 = vpop.f32.mrf.mxu0
    %v1077 = vadd.f32 %v898, %v1076
    %v1078 = vpop.f32.mrf.mxu0
    %1079 = vmatprep.mubr.f32.mxu0 0.0
    %1080 = vmatmul.mubr.f32.gmra.mxu0 %v836
    %v1081 = vpop.f32.mrf.mxu0
    %v1082 = vadd.f32 %v898, %v1081
    %v1083 = vpop.f32.mrf.mxu0
    %1084 = vmatprep.mubr.f32.mxu0 0.0
    %1085 = vmatmul.mubr.f32.gmra.mxu0 %v837
    %v1086 = vpop.f32.mrf.mxu0
    %v1087 = vadd.f32 %v898, %v1086
    %v1088 = vpop.f32.mrf.mxu0
    %1089 = vmatprep.mubr.f32.mxu0 0.0
    %1090 = vmatmul.mubr.f32.gmra.mxu0 %v838
    %v1091 = vpop.f32.mrf.mxu0
    %v1092 = vadd.f32 %v898, %v1091
    %v1093 = vpop.f32.mrf.mxu0
    %1094 = vmatprep.mubr.f32.mxu0 0.0
    %1095 = vmatmul.mubr.f32.gmra.mxu0 %v839
    %v1096 = vpop.f32.mrf.mxu0
    %v1097 = vadd.f32 %v898, %v1096
    %v1098 = vpop.f32.mrf.mxu0
    %1099 = vmatprep.mubr.f32.mxu0 0.0
    %1100 = vmatmul.mubr.f32.gmra.mxu0 %v840
    %v1101 = vpop.f32.mrf.mxu0
    %v1102 = vadd.f32 %v898, %v1101
    %v1103 = vpop.f32.mrf.mxu0
    %1104 = vmatprep.mubr.f32.mxu0 0.0
    %1105 = vmatmul.mubr.f32.gmra.mxu0 %v841
    %v1106 = vpop.f32.mrf.mxu0
    %v1107 = vadd.f32 %v898, %v1106
    %v1108 = vpop.f32.mrf.mxu0
    %1109 = vmatprep.mubr.f32.mxu0 0.0
    %1110 = vmatmul.mubr.f32.gmra.mxu0 %v842
    %v1111 = vpop.f32.mrf.mxu0
    %v1112 = vadd.f32 %v898, %v1111
    %v1113 = vpop.f32.mrf.mxu0
    %1114 = vmatprep.mubr.f32.mxu0 0.0
    %1115 = vmatmul.mubr.f32.gmra.mxu0 %v843
    %v1116 = vpop.f32.mrf.mxu0
    %v1117 = vadd.f32 %v898, %v1116
    %v1118 = vpop.f32.mrf.mxu0
    %1119 = vmatprep.mubr.f32.mxu0 0.0
    %1120 = vmatmul.mubr.f32.gmra.mxu0 %v844
    %v1121 = vpop.f32.mrf.mxu0
    %v1122 = vadd.f32 %v898, %v1121
    %v1123 = vpop.f32.mrf.mxu0
    %1124 = vmatprep.mubr.f32.mxu0 0.0
    %1125 = vmatmul.mubr.f32.gmra.mxu0 %v845
    %v1126 = vpop.f32.mrf.mxu0
    %v1127 = vadd.f32 %v898, %v1126
    %v1128 = vpop.f32.mrf.mxu0
    %1129 = vmatprep.mubr.f32.mxu0 0.0
    %1130 = vmatmul.mubr.f32.gmra.mxu0 %v846
    %v1131 = vpop.f32.mrf.mxu0
    %v1132 = vadd.f32 %v898, %v1131
    %v1133 = vpop.f32.mrf.mxu0
    %1134 = vmatprep.mubr.f32.mxu0 0.0
    %1135 = vmatmul.mubr.f32.gmra.mxu0 %v847
    %v1136 = vpop.f32.mrf.mxu0
    %v1137 = vadd.f32 %v898, %v1136
    %v1138 = vpop.f32.mrf.mxu0
    %1139 = vmatprep.mubr.f32.mxu0 0.0
    %1140 = vmatmul.mubr.f32.gmra.mxu0 %v848
    %v1141 = vpop.f32.mrf.mxu0
    %v1142 = vadd.f32 %v898, %v1141
    %v1143 = vpop.f32.mrf.mxu0
    %1144 = vmatprep.mubr.f32.mxu0 0.0
    %1145 = vmatmul.mubr.f32.gmra.mxu0 %v849
    %v1146 = vpop.f32.mrf.mxu0
    %v1147 = vadd.f32 %v898, %v1146
    %v1148 = vpop.f32.mrf.mxu0
    %1149 = vmatprep.mubr.f32.mxu0 0.0
    %1150 = vmatmul.mubr.f32.gmra.mxu0 %v850
    %v1151 = vpop.f32.mrf.mxu0
    %v1152 = vadd.f32 %v898, %v1151
    %v1153 = vpop.f32.mrf.mxu0
    %1154 = vmatprep.mubr.f32.mxu0 0.0
    %1155 = vmatmul.mubr.f32.gmra.mxu0 %v851
    %v1156 = vpop.f32.mrf.mxu0
    %v1157 = vadd.f32 %v898, %v1156
    %v1158 = vpop.f32.mrf.mxu0
    %1159 = vmatprep.mubr.f32.mxu0 0.0
    %1160 = vmatmul.mubr.f32.gmra.mxu0 %v852
    %v1161 = vpop.f32.mrf.mxu0
    %v1162 = vadd.f32 %v898, %v1161
    %v1163 = vpop.f32.mrf.mxu0
    %1164 = vmatprep.mubr.f32.mxu0 0.0
    %1165 = vmatmul.mubr.f32.gmra.mxu0 %v853
    %v1166 = vpop.f32.mrf.mxu0
    %v1167 = vadd.f32 %v898, %v1166
    %v1168 = vpop.f32.mrf.mxu0
    %1169 = vmatprep.mubr.f32.mxu0 0.0
    %1170 = vmatmul.mubr.f32.gmra.mxu0 %v854
    %v1171 = vpop.f32.mrf.mxu0
    %v1172 = vadd.f32 %v898, %v1171
    %v1173 = vpop.f32.mrf.mxu0
    %1174 = vmatprep.mubr.f32.mxu0 0.0
    %1175 = vmatmul.mubr.f32.gmra.mxu0 %v855
    %v1176 = vpop.f32.mrf.mxu0
    %v1177 = vadd.f32 %v898, %v1176
    %v1178 = vpop.f32.mrf.mxu0
    %1179 = vmatprep.mubr.f32.mxu0 0.0
    %1180 = vmatmul.mubr.f32.gmra.mxu0 %v856
    %v1181 = vpop.f32.mrf.mxu0
    %v1182 = vadd.f32 %v898, %v1181
    %v1183 = vpop.f32.mrf.mxu0
    %1184 = vmatprep.mubr.f32.mxu0 0.0
    %1185 = vmatmul.mubr.f32.gmra.mxu0 %v857
    %v1186 = vpop.f32.mrf.mxu0
    %v1187 = vadd.f32 %v898, %v1186
    %v1188 = vpop.f32.mrf.mxu0
    %1189 = vmatprep.mubr.f32.mxu0 0.0
    %1190 = vmatmul.mubr.f32.gmra.mxu0 %v858
    %v1191 = vpop.f32.mrf.mxu0
    %v1192 = vadd.f32 %v898, %v1191
    %v1193 = vpop.f32.mrf.mxu0
    %1194 = vmatprep.mubr.f32.mxu0 0.0
    %1195 = vmatmul.mubr.f32.gmra.mxu0 %v859
    %v1196 = vpop.f32.mrf.mxu0
    %v1197 = vadd.f32 %v898, %v1196
    %v1198 = vpop.f32.mrf.mxu0
    %1199 = vmatprep.mubr.f32.mxu0 0.0
    %1200 = vmatmul.mubr.f32.gmra.mxu0 %v860
    %v1201 = vpop.f32.mrf.mxu0
    %v1202 = vadd.f32 %v898, %v1201
    %v1203 = vpop.f32.mrf.mxu0
    %1204 = vmatprep.mubr.f32.mxu0 0.0
    %1205 = vmatmul.mubr.f32.gmra.mxu0 %v861
    %v1206 = vpop.f32.mrf.mxu0
    %v1207 = vadd.f32 %v898, %v1206
    %v1208 = vpop.f32.mrf.mxu0
    %1209 = vmatprep.mubr.f32.mxu0 0.0
    %1210 = vmatmul.mubr.f32.gmra.mxu0 %v862
    %v1211 = vpop.f32.mrf.mxu0
    %v1212 = vadd.f32 %v898, %v1211
    %v1213 = vpop.f32.mrf.mxu0
    %1214 = vmatprep.mubr.f32.mxu0 0.0
    %1215 = vmatmul.mubr.f32.gmra.mxu0 %v863
    %v1216 = vpop.f32.mrf.mxu0
    %v1217 = vadd.f32 %v898, %v1216
    %v1218 = vpop.f32.mrf.mxu0
    %1219 = vmatprep.mubr.f32.mxu0 0.0
    %1220 = vmatmul.mubr.f32.gmra.mxu0 %v864
    %v1221 = vpop.f32.mrf.mxu0
    %v1222 = vadd.f32 %v898, %v1221
    %v1223 = vpop.f32.mrf.mxu0
    %1224 = vmatprep.mubr.f32.mxu0 0.0
    %1225 = vmatmul.mubr.f32.gmra.mxu0 %v865
    %v1226 = vpop.f32.mrf.mxu0
    %v1227 = vadd.f32 %v898, %v1226
    %v1228 = vpop.f32.mrf.mxu0
    %1229 = vmatprep.mubr.f32.mxu0 0.0
    %1230 = vmatmul.mubr.f32.gmra.mxu0 %v866
    %v1231 = vpop.f32.mrf.mxu0
    %v1232 = vadd.f32 %v898, %v1231
    %v1233 = vpop.f32.mrf.mxu0
    %1234 = vmatprep.mubr.f32.mxu0 0.0
    %1235 = vmatmul.mubr.f32.gmra.mxu0 %v867
    %v1236 = vpop.f32.mrf.mxu0
    %v1237 = vadd.f32 %v898, %v1236
    %v1238 = vpop.f32.mrf.mxu0
    %1239 = vmatprep.mubr.f32.mxu0 0.0
    %1240 = vmatmul.mubr.f32.gmra.mxu0 %v868
    %v1241 = vpop.f32.mrf.mxu0
    %v1242 = vadd.f32 %v898, %v1241
    %v1243 = vpop.f32.mrf.mxu0
    %1244 = vmatprep.mubr.f32.mxu0 0.0
    %1245 = vmatmul.mubr.f32.gmra.mxu0 %v869
    %v1246 = vpop.f32.mrf.mxu0
    %v1247 = vadd.f32 %v898, %v1246
    %v1248 = vpop.f32.mrf.mxu0
    %1249 = vmatprep.mubr.f32.mxu0 0.0
    %1250 = vmatmul.mubr.f32.gmra.mxu0 %v870
    %v1251 = vpop.f32.mrf.mxu0
    %v1252 = vadd.f32 %v898, %v1251
    %v1253 = vpop.f32.mrf.mxu0
    %1254 = vmatprep.mubr.f32.mxu0 0.0
    %1255 = vmatmul.mubr.f32.gmra.mxu0 %v871
    %v1256 = vpop.f32.mrf.mxu0
    %v1257 = vadd.f32 %v898, %v1256
    %v1258 = vpop.f32.mrf.mxu0
    %1259 = vmatprep.mubr.f32.mxu0 0.0
    %1260 = vmatmul.mubr.f32.gmra.mxu0 %v872
    %v1261 = vpop.f32.mrf.mxu0
    %v1262 = vadd.f32 %v898, %v1261
    %v1263 = vpop.f32.mrf.mxu0
    %1264 = vmatprep.mubr.f32.mxu0 0.0
    %1265 = vmatmul.mubr.f32.gmra.mxu0 %v873
    %v1266 = vpop.f32.mrf.mxu0
    %v1267 = vadd.f32 %v898, %v1266
    %v1268 = vpop.f32.mrf.mxu0
    %1269 = vmatprep.mubr.f32.mxu0 0.0
    %1270 = vmatmul.mubr.f32.gmra.mxu0 %v874
    %v1271 = vpop.f32.mrf.mxu0
    %v1272 = vadd.f32 %v898, %v1271
    %v1273 = vpop.f32.mrf.mxu0
    %1274 = vmatprep.mubr.f32.mxu0 0.0
    %1275 = vmatmul.mubr.f32.gmra.mxu0 %v875
    %v1276 = vpop.f32.mrf.mxu0
    %v1277 = vadd.f32 %v898, %v1276
    %v1278 = vpop.f32.mrf.mxu0
    %1279 = vmatprep.mubr.f32.mxu0 0.0
    %1280 = vmatmul.mubr.f32.gmra.mxu0 %v876
    %v1281 = vpop.f32.mrf.mxu0
    %v1282 = vadd.f32 %v898, %v1281
    %v1283 = vpop.f32.mrf.mxu0
    %1284 = vdwg.mxu0
    %vm1285 = vcmp.gt.f32.partialorder %v967, 0.0
    %vm1286 = vcmp.gt.f32.partialorder %v972, 0.0
    %vm1287 = vcmp.gt.f32.partialorder %v977, 0.0
    %vm1288 = vcmp.gt.f32.partialorder %v982, 0.0
    %vm1289 = vcmp.gt.f32.partialorder %v987, 0.0
    %vm1290 = vcmp.gt.f32.partialorder %v992, 0.0
    %vm1291 = vcmp.gt.f32.partialorder %v997, 0.0
    %vm1292 = vcmp.gt.f32.partialorder %v1002, 0.0
    %vm1293 = vcmp.gt.f32.partialorder %v1007, 0.0
    %vm1294 = vcmp.gt.f32.partialorder %v1012, 0.0
    %vm1295 = vcmp.gt.f32.partialorder %v1017, 0.0
    %vm1296 = vcmp.gt.f32.partialorder %v1022, 0.0
    %vm1297 = vcmp.gt.f32.partialorder %v1027, 0.0
    %vm1298 = vcmp.gt.f32.partialorder %v1032, 0.0
    %vm1299 = vcmp.gt.f32.partialorder %v1037, 0.0
    %vm1300 = vcmp.gt.f32.partialorder %v1042, 0.0
    %vm1301 = vcmp.gt.f32.partialorder %v1047, 0.0
    %vm1302 = vcmp.gt.f32.partialorder %v1052, 0.0
    %vm1303 = vcmp.gt.f32.partialorder %v1057, 0.0
    %vm1304 = vcmp.gt.f32.partialorder %v1062, 0.0
    %vm1305 = vcmp.gt.f32.partialorder %v1067, 0.0
    %vm1306 = vcmp.gt.f32.partialorder %v1072, 0.0
    %vm1307 = vcmp.gt.f32.partialorder %v1077, 0.0
    %vm1308 = vcmp.gt.f32.partialorder %v1082, 0.0
    %vm1309 = vcmp.gt.f32.partialorder %v1087, 0.0
    %vm1310 = vcmp.gt.f32.partialorder %v1092, 0.0
    %vm1311 = vcmp.gt.f32.partialorder %v1097, 0.0
    %vm1312 = vcmp.gt.f32.partialorder %v1102, 0.0
    %vm1313 = vcmp.gt.f32.partialorder %v1107, 0.0
    %vm1314 = vcmp.gt.f32.partialorder %v1112, 0.0
    %vm1315 = vcmp.gt.f32.partialorder %v1117, 0.0
    %vm1316 = vcmp.gt.f32.partialorder %v1122, 0.0
    %vm1317 = vcmp.gt.f32.partialorder %v1127, 0.0
    %vm1318 = vcmp.gt.f32.partialorder %v1132, 0.0
    %vm1319 = vcmp.gt.f32.partialorder %v1137, 0.0
    %vm1320 = vcmp.gt.f32.partialorder %v1142, 0.0
    %vm1321 = vcmp.gt.f32.partialorder %v1147, 0.0
    %vm1322 = vcmp.gt.f32.partialorder %v1152, 0.0
    %vm1323 = vcmp.gt.f32.partialorder %v1157, 0.0
    %vm1324 = vcmp.gt.f32.partialorder %v1162, 0.0
    %vm1325 = vcmp.gt.f32.partialorder %v1167, 0.0
    %vm1326 = vcmp.gt.f32.partialorder %v1172, 0.0
    %vm1327 = vcmp.gt.f32.partialorder %v1177, 0.0
    %vm1328 = vcmp.gt.f32.partialorder %v1182, 0.0
    %vm1329 = vcmp.gt.f32.partialorder %v1187, 0.0
    %vm1330 = vcmp.gt.f32.partialorder %v1192, 0.0
    %vm1331 = vcmp.gt.f32.partialorder %v1197, 0.0
    %vm1332 = vcmp.gt.f32.partialorder %v1202, 0.0
    %vm1333 = vcmp.gt.f32.partialorder %v1207, 0.0
    %vm1334 = vcmp.gt.f32.partialorder %v1212, 0.0
    %vm1335 = vcmp.gt.f32.partialorder %v1217, 0.0
    %vm1336 = vcmp.gt.f32.partialorder %v1222, 0.0
    %vm1337 = vcmp.gt.f32.partialorder %v1227, 0.0
    %vm1338 = vcmp.gt.f32.partialorder %v1232, 0.0
    %vm1339 = vcmp.gt.f32.partialorder %v1237, 0.0
    %vm1340 = vcmp.gt.f32.partialorder %v1242, 0.0
    %vm1341 = vcmp.gt.f32.partialorder %v1247, 0.0
    %vm1342 = vcmp.gt.f32.partialorder %v1252, 0.0
    %vm1343 = vcmp.gt.f32.partialorder %v1257, 0.0
    %vm1344 = vcmp.gt.f32.partialorder %v1262, 0.0
    %vm1345 = vcmp.gt.f32.partialorder %v1267, 0.0
    %vm1346 = vcmp.gt.f32.partialorder %v1272, 0.0
    %vm1347 = vcmp.gt.f32.partialorder %v1277, 0.0
    %vm1348 = vcmp.gt.f32.partialorder %v1282, 0.0
    %v1349 = vmul.f32 %v967, 0.2
    %v1350 = vmul.f32 %v972, 0.2
    %v1351 = vmul.f32 %v977, 0.2
    %v1352 = vmul.f32 %v982, 0.2
    %v1353 = vmul.f32 %v987, 0.2
    %v1354 = vmul.f32 %v992, 0.2
    %v1355 = vmul.f32 %v997, 0.2
    %v1356 = vmul.f32 %v1002, 0.2
    %v1357 = vmul.f32 %v1007, 0.2
    %v1358 = vmul.f32 %v1012, 0.2
    %v1359 = vmul.f32 %v1017, 0.2
    %v1360 = vmul.f32 %v1022, 0.2
    %v1361 = vmul.f32 %v1027, 0.2
    %v1362 = vmul.f32 %v1032, 0.2
    %v1363 = vmul.f32 %v1037, 0.2
    %v1364 = vmul.f32 %v1042, 0.2
    %v1365 = vmul.f32 %v1047, 0.2
    %v1366 = vmul.f32 %v1052, 0.2
    %v1367 = vmul.f32 %v1057, 0.2
    %v1368 = vmul.f32 %v1062, 0.2
    %v1369 = vmul.f32 %v1067, 0.2
    %v1370 = vmul.f32 %v1072, 0.2
    %v1371 = vmul.f32 %v1077, 0.2
    %v1372 = vmul.f32 %v1082, 0.2
    %v1373 = vmul.f32 %v1087, 0.2
    %v1374 = vmul.f32 %v1092, 0.2
    %v1375 = vmul.f32 %v1097, 0.2
    %v1376 = vmul.f32 %v1102, 0.2
    %v1377 = vmul.f32 %v1107, 0.2
    %v1378 = vmul.f32 %v1112, 0.2
    %v1379 = vmul.f32 %v1117, 0.2
    %v1380 = vmul.f32 %v1122, 0.2
    %v1381 = vmul.f32 %v1127, 0.2
    %v1382 = vmul.f32 %v1132, 0.2
    %v1383 = vmul.f32 %v1137, 0.2
    %v1384 = vmul.f32 %v1142, 0.2
    %v1385 = vmul.f32 %v1147, 0.2
    %v1386 = vmul.f32 %v1152, 0.2
    %v1387 = vmul.f32 %v1157, 0.2
    %v1388 = vmul.f32 %v1162, 0.2
    %v1389 = vmul.f32 %v1167, 0.2
    %v1390 = vmul.f32 %v1172, 0.2
    %v1391 = vmul.f32 %v1177, 0.2
    %v1392 = vmul.f32 %v1182, 0.2
    %v1393 = vmul.f32 %v1187, 0.2
    %v1394 = vmul.f32 %v1192, 0.2
    %v1395 = vmul.f32 %v1197, 0.2
    %v1396 = vmul.f32 %v1202, 0.2
    %v1397 = vmul.f32 %v1207, 0.2
    %v1398 = vmul.f32 %v1212, 0.2
    %v1399 = vmul.f32 %v1217, 0.2
    %v1400 = vmul.f32 %v1222, 0.2
    %v1401 = vmul.f32 %v1227, 0.2
    %v1402 = vmul.f32 %v1232, 0.2
    %v1403 = vmul.f32 %v1237, 0.2
    %v1404 = vmul.f32 %v1242, 0.2
    %v1405 = vmul.f32 %v1247, 0.2
    %v1406 = vmul.f32 %v1252, 0.2
    %v1407 = vmul.f32 %v1257, 0.2
    %v1408 = vmul.f32 %v1262, 0.2
    %v1409 = vmul.f32 %v1267, 0.2
    %v1410 = vmul.f32 %v1272, 0.2
    %v1411 = vmul.f32 %v1277, 0.2
    %v1412 = vmul.f32 %v1282, 0.2
    %v1413 = vsel %vm1285, %v967, %v1349
    %v1414 = vsel %vm1286, %v972, %v1350
    %v1415 = vsel %vm1287, %v977, %v1351
    %v1416 = vsel %vm1288, %v982, %v1352
    %v1417 = vsel %vm1289, %v987, %v1353
    %v1418 = vsel %vm1290, %v992, %v1354
    %v1419 = vsel %vm1291, %v997, %v1355
    %v1420 = vsel %vm1292, %v1002, %v1356
    %v1421 = vsel %vm1293, %v1007, %v1357
    %v1422 = vsel %vm1294, %v1012, %v1358
    %v1423 = vsel %vm1295, %v1017, %v1359
    %v1424 = vsel %vm1296, %v1022, %v1360
    %v1425 = vsel %vm1297, %v1027, %v1361
    %v1426 = vsel %vm1298, %v1032, %v1362
    %v1427 = vsel %vm1299, %v1037, %v1363
    %v1428 = vsel %vm1300, %v1042, %v1364
    %v1429 = vsel %vm1301, %v1047, %v1365
    %v1430 = vsel %vm1302, %v1052, %v1366
    %v1431 = vsel %vm1303, %v1057, %v1367
    %v1432 = vsel %vm1304, %v1062, %v1368
    %v1433 = vsel %vm1305, %v1067, %v1369
    %v1434 = vsel %vm1306, %v1072, %v1370
    %v1435 = vsel %vm1307, %v1077, %v1371
    %v1436 = vsel %vm1308, %v1082, %v1372
    %v1437 = vsel %vm1309, %v1087, %v1373
    %v1438 = vsel %vm1310, %v1092, %v1374
    %v1439 = vsel %vm1311, %v1097, %v1375
    %v1440 = vsel %vm1312, %v1102, %v1376
    %v1441 = vsel %vm1313, %v1107, %v1377
    %v1442 = vsel %vm1314, %v1112, %v1378
    %v1443 = vsel %vm1315, %v1117, %v1379
    %v1444 = vsel %vm1316, %v1122, %v1380
    %v1445 = vsel %vm1317, %v1127, %v1381
    %v1446 = vsel %vm1318, %v1132, %v1382
    %v1447 = vsel %vm1319, %v1137, %v1383
    %v1448 = vsel %vm1320, %v1142, %v1384
    %v1449 = vsel %vm1321, %v1147, %v1385
    %v1450 = vsel %vm1322, %v1152, %v1386
    %v1451 = vsel %vm1323, %v1157, %v1387
    %v1452 = vsel %vm1324, %v1162, %v1388
    %v1453 = vsel %vm1325, %v1167, %v1389
    %v1454 = vsel %vm1326, %v1172, %v1390
    %v1455 = vsel %vm1327, %v1177, %v1391
    %v1456 = vsel %vm1328, %v1182, %v1392
    %v1457 = vsel %vm1329, %v1187, %v1393
    %v1458 = vsel %vm1330, %v1192, %v1394
    %v1459 = vsel %vm1331, %v1197, %v1395
    %v1460 = vsel %vm1332, %v1202, %v1396
    %v1461 = vsel %vm1333, %v1207, %v1397
    %v1462 = vsel %vm1334, %v1212, %v1398
    %v1463 = vsel %vm1335, %v1217, %v1399
    %v1464 = vsel %vm1336, %v1222, %v1400
    %v1465 = vsel %vm1337, %v1227, %v1401
    %v1466 = vsel %vm1338, %v1232, %v1402
    %v1467 = vsel %vm1339, %v1237, %v1403
    %v1468 = vsel %vm1340, %v1242, %v1404
    %v1469 = vsel %vm1341, %v1247, %v1405
    %v1470 = vsel %vm1342, %v1252, %v1406
    %v1471 = vsel %vm1343, %v1257, %v1407
    %v1472 = vsel %vm1344, %v1262, %v1408
    %v1473 = vsel %vm1345, %v1267, %v1409
    %v1474 = vsel %vm1346, %v1272, %v1410
    %v1475 = vsel %vm1347, %v1277, %v1411
    %v1476 = vsel %vm1348, %v1282, %v1412
    %v1477 = vld [vmem:[%s5] sm:$0x1]
    %s1478 = sld [smem:[#allocation2]]
    %v1479 = vstv %s1478
    %v1481 = vsel %vm107, %v1477, 0
    %v1484 = vsel %vm107, %v1413, 0
    %v1487 = vsel %vm107, %v1414, 0
    %v1490 = vsel %vm107, %v1415, 0
    %v1493 = vsel %vm107, %v1416, 0
    %v1496 = vsel %vm107, %v1417, 0
    %v1499 = vsel %vm107, %v1418, 0
    %v1502 = vsel %vm107, %v1419, 0
    %v1505 = vsel %vm107, %v1420, 0
    %v1508 = vsel %vm107, %v1421, 0
    %v1511 = vsel %vm107, %v1422, 0
    %v1514 = vsel %vm107, %v1423, 0
    %v1517 = vsel %vm107, %v1424, 0
    %v1520 = vsel %vm107, %v1425, 0
    %v1523 = vsel %vm107, %v1426, 0
    %v1526 = vsel %vm107, %v1427, 0
    %v1529 = vsel %vm107, %v1428, 0
    %v1532 = vsel %vm107, %v1429, 0
    %v1535 = vsel %vm107, %v1430, 0
    %v1538 = vsel %vm107, %v1431, 0
    %v1541 = vsel %vm107, %v1432, 0
    %v1544 = vsel %vm107, %v1433, 0
    %v1547 = vsel %vm107, %v1434, 0
    %v1550 = vsel %vm107, %v1435, 0
    %v1553 = vsel %vm107, %v1436, 0
    %v1556 = vsel %vm107, %v1437, 0
    %v1559 = vsel %vm107, %v1438, 0
    %v1562 = vsel %vm107, %v1439, 0
    %v1565 = vsel %vm107, %v1440, 0
    %v1568 = vsel %vm107, %v1441, 0
    %v1571 = vsel %vm107, %v1442, 0
    %v1574 = vsel %vm107, %v1443, 0
    %v1577 = vsel %vm107, %v1444, 0
    %v1580 = vsel %vm107, %v1445, 0
    %v1583 = vsel %vm107, %v1446, 0
    %v1586 = vsel %vm107, %v1447, 0
    %v1589 = vsel %vm107, %v1448, 0
    %v1592 = vsel %vm107, %v1449, 0
    %v1595 = vsel %vm107, %v1450, 0
    %v1598 = vsel %vm107, %v1451, 0
    %v1601 = vsel %vm107, %v1452, 0
    %v1604 = vsel %vm107, %v1453, 0
    %v1607 = vsel %vm107, %v1454, 0
    %v1610 = vsel %vm107, %v1455, 0
    %v1613 = vsel %vm107, %v1456, 0
    %v1616 = vsel %vm107, %v1457, 0
    %v1619 = vsel %vm107, %v1458, 0
    %v1622 = vsel %vm107, %v1459, 0
    %v1625 = vsel %vm107, %v1460, 0
    %v1628 = vsel %vm107, %v1461, 0
    %v1631 = vsel %vm107, %v1462, 0
    %v1634 = vsel %vm107, %v1463, 0
    %v1637 = vsel %vm107, %v1464, 0
    %v1640 = vsel %vm107, %v1465, 0
    %v1643 = vsel %vm107, %v1466, 0
    %v1646 = vsel %vm107, %v1467, 0
    %v1649 = vsel %vm107, %v1468, 0
    %v1652 = vsel %vm107, %v1469, 0
    %v1655 = vsel %vm107, %v1470, 0
    %v1658 = vsel %vm107, %v1471, 0
    %v1661 = vsel %vm107, %v1472, 0
    %v1664 = vsel %vm107, %v1473, 0
    %v1667 = vsel %vm107, %v1474, 0
    %v1670 = vsel %vm107, %v1475, 0
    %v1673 = vsel %vm107, %v1476, 0
    %1675 = vmatprep.subr.mxu0 0.0
    %1676 = vmatpush1.xpose.msra.mxu0 %v1529
    %1677 = vmatprep.subr.mxu0 0.0
    %1678 = vmatpush1.xpose.msra.mxu0 %v1526
    %1679 = vmatprep.subr.mxu0 0.0
    %1680 = vmatpush1.xpose.msra.mxu0 %v1523
    %1681 = vmatprep.subr.mxu0 0.0
    %1682 = vmatpush1.xpose.msra.mxu0 %v1520
    %1683 = vmatprep.subr.mxu0 0.0
    %1684 = vmatpush1.xpose.msra.mxu0 %v1517
    %1685 = vmatprep.subr.mxu0 0.0
    %1686 = vmatpush1.xpose.msra.mxu0 %v1514
    %1687 = vmatprep.subr.mxu0 0.0
    %1688 = vmatpush1.xpose.msra.mxu0 %v1511
    %1689 = vmatprep.subr.mxu0 0.0
    %1690 = vmatpush1.xpose.msra.mxu0 %v1508
    %1691 = vmatprep.subr.mxu0 0.0
    %1692 = vmatpush1.xpose.msra.mxu0 %v1505
    %1693 = vmatprep.subr.mxu0 0.0
    %1694 = vmatpush1.xpose.msra.mxu0 %v1502
    %1695 = vmatprep.subr.mxu0 0.0
    %1696 = vmatpush1.xpose.msra.mxu0 %v1499
    %1697 = vmatprep.subr.mxu0 0.0
    %1698 = vmatpush1.xpose.msra.mxu0 %v1496
    %1699 = vmatprep.subr.mxu0 0.0
    %1700 = vmatpush1.xpose.msra.mxu0 %v1493
    %1701 = vmatprep.subr.mxu0 0.0
    %1702 = vmatpush1.xpose.msra.mxu0 %v1490
    %1703 = vmatprep.subr.mxu0 0.0
    %1704 = vmatpush1.xpose.msra.mxu0 %v1487
    %1705 = vmatprep.subr.mxu0 0.0
    %1706 = vmatpush1.xpose.msra.mxu0 %v1484
    %1707 = vmatprep.subr.mxu0 0.0
    %1708 = vmatpush2.xpose.msra.mxu0 %v1577
    %1709 = vmatprep.subr.mxu0 0.0
    %1710 = vmatpush2.xpose.msra.mxu0 %v1574
    %1711 = vmatprep.subr.mxu0 0.0
    %1712 = vmatpush2.xpose.msra.mxu0 %v1571
    %1713 = vmatprep.subr.mxu0 0.0
    %1714 = vmatpush2.xpose.msra.mxu0 %v1568
    %1715 = vmatprep.subr.mxu0 0.0
    %1716 = vmatpush2.xpose.msra.mxu0 %v1565
    %1717 = vmatprep.subr.mxu0 0.0
    %1718 = vmatpush2.xpose.msra.mxu0 %v1562
    %1719 = vmatprep.subr.mxu0 0.0
    %1720 = vmatpush2.xpose.msra.mxu0 %v1559
    %1721 = vmatprep.subr.mxu0 0.0
    %1722 = vmatpush2.xpose.msra.mxu0 %v1556
    %1723 = vmatprep.subr.mxu0 0.0
    %1724 = vmatpush2.xpose.msra.mxu0 %v1553
    %1725 = vmatprep.subr.mxu0 0.0
    %1726 = vmatpush2.xpose.msra.mxu0 %v1550
    %1727 = vmatprep.subr.mxu0 0.0
    %1728 = vmatpush2.xpose.msra.mxu0 %v1547
    %1729 = vmatprep.subr.mxu0 0.0
    %1730 = vmatpush2.xpose.msra.mxu0 %v1544
    %1731 = vmatprep.subr.mxu0 0.0
    %1732 = vmatpush2.xpose.msra.mxu0 %v1541
    %1733 = vmatprep.subr.mxu0 0.0
    %1734 = vmatpush2.xpose.msra.mxu0 %v1538
    %1735 = vmatprep.subr.mxu0 0.0
    %1736 = vmatpush2.xpose.msra.mxu0 %v1535
    %1737 = vmatprep.subr.mxu0 0.0
    %1738 = vmatpush2.xpose.msra.mxu0 %v1532
    %1739 = vmatprep.mubr.f32.mxu0 0.0
    %1740 = vmatmul.mubr.f32.gmra.mxu0 %v1481
    %v1741 = vpop.f32.mrf.mxu0
    %v1742 = vadd.f32 %v1479, %v1741
    %v1743 = vpop.f32.mrf.mxu0
    %v1744 = vadd.f32 %v1479, %v1743
    %1745 = vdwg.mxu0
    %1746 = vmatprep.subr.mxu0 0.0
    %1747 = vmatpush1.xpose.msra.mxu0 %v1625
    %1748 = vmatprep.subr.mxu0 0.0
    %1749 = vmatpush1.xpose.msra.mxu0 %v1622
    %1750 = vmatprep.subr.mxu0 0.0
    %1751 = vmatpush1.xpose.msra.mxu0 %v1619
    %1752 = vmatprep.subr.mxu0 0.0
    %1753 = vmatpush1.xpose.msra.mxu0 %v1616
    %1754 = vmatprep.subr.mxu0 0.0
    %1755 = vmatpush1.xpose.msra.mxu0 %v1613
    %1756 = vmatprep.subr.mxu0 0.0
    %1757 = vmatpush1.xpose.msra.mxu0 %v1610
    %1758 = vmatprep.subr.mxu0 0.0
    %1759 = vmatpush1.xpose.msra.mxu0 %v1607
    %1760 = vmatprep.subr.mxu0 0.0
    %1761 = vmatpush1.xpose.msra.mxu0 %v1604
    %1762 = vmatprep.subr.mxu0 0.0
    %1763 = vmatpush1.xpose.msra.mxu0 %v1601
    %1764 = vmatprep.subr.mxu0 0.0
    %1765 = vmatpush1.xpose.msra.mxu0 %v1598
    %1766 = vmatprep.subr.mxu0 0.0
    %1767 = vmatpush1.xpose.msra.mxu0 %v1595
    %1768 = vmatprep.subr.mxu0 0.0
    %1769 = vmatpush1.xpose.msra.mxu0 %v1592
    %1770 = vmatprep.subr.mxu0 0.0
    %1771 = vmatpush1.xpose.msra.mxu0 %v1589
    %1772 = vmatprep.subr.mxu0 0.0
    %1773 = vmatpush1.xpose.msra.mxu0 %v1586
    %1774 = vmatprep.subr.mxu0 0.0
    %1775 = vmatpush1.xpose.msra.mxu0 %v1583
    %1776 = vmatprep.subr.mxu0 0.0
    %1777 = vmatpush1.xpose.msra.mxu0 %v1580
    %1778 = vmatprep.subr.mxu0 0.0
    %1779 = vmatpush2.xpose.msra.mxu0 %v1673
    %1780 = vmatprep.subr.mxu0 0.0
    %1781 = vmatpush2.xpose.msra.mxu0 %v1670
    %1782 = vmatprep.subr.mxu0 0.0
    %1783 = vmatpush2.xpose.msra.mxu0 %v1667
    %1784 = vmatprep.subr.mxu0 0.0
    %1785 = vmatpush2.xpose.msra.mxu0 %v1664
    %1786 = vmatprep.subr.mxu0 0.0
    %1787 = vmatpush2.xpose.msra.mxu0 %v1661
    %1788 = vmatprep.subr.mxu0 0.0
    %1789 = vmatpush2.xpose.msra.mxu0 %v1658
    %1790 = vmatprep.subr.mxu0 0.0
    %1791 = vmatpush2.xpose.msra.mxu0 %v1655
    %1792 = vmatprep.subr.mxu0 0.0
    %1793 = vmatpush2.xpose.msra.mxu0 %v1652
    %1794 = vmatprep.subr.mxu0 0.0
    %1795 = vmatpush2.xpose.msra.mxu0 %v1649
    %1796 = vmatprep.subr.mxu0 0.0
    %1797 = vmatpush2.xpose.msra.mxu0 %v1646
    %1798 = vmatprep.subr.mxu0 0.0
    %1799 = vmatpush2.xpose.msra.mxu0 %v1643
    %1800 = vmatprep.subr.mxu0 0.0
    %1801 = vmatpush2.xpose.msra.mxu0 %v1640
    %1802 = vmatprep.subr.mxu0 0.0
    %1803 = vmatpush2.xpose.msra.mxu0 %v1637
    %1804 = vmatprep.subr.mxu0 0.0
    %1805 = vmatpush2.xpose.msra.mxu0 %v1634
    %1806 = vmatprep.subr.mxu0 0.0
    %1807 = vmatpush2.xpose.msra.mxu0 %v1631
    %1808 = vmatprep.subr.mxu0 0.0
    %1809 = vmatpush2.xpose.msra.mxu0 %v1628
    %1810 = vmatprep.mubr.f32.mxu0 0.0
    %1811 = vmatmul.mubr.f32.gmra.mxu0 %v1481
    %v1812 = vpop.f32.mrf.mxu0
    %v1813 = vadd.f32 %v1479, %v1812
    %v1814 = vpop.f32.mrf.mxu0
    %v1815 = vadd.f32 %v1479, %v1814
    %1816 = vdwg.mxu0
    %v1821 = vcombine.low %v1742, %v1744
    %v1822 = vcombine.low %v1813, %v1815
    %v1824 = vunpack.c.l.s4 1966171168
    %v1825 = vunpack.c.0.s8 %v1824
    %v1826 = vlaneseq
    %v1827 = vshrl.u32 %v1826, 7
    %v1828 = vsub.s32 %v1825, %v1827
    %v1829 = vrot.slane %v1821, %v1828
    %v1831 = vunpack.c.l.s4 1966171168
    %v1832 = vunpack.c.0.s8 %v1831
    %v1833 = vlaneseq
    %v1834 = vshrl.u32 %v1833, 7
    %v1835 = vsub.s32 %v1832, %v1834
    %v1836 = vrot.slane %v1822, %v1835
    %v1837 = vcombine.low %v1829, %v1836
    %v1839 = vunpack.c.l.s4 1966171168
    %v1840 = vunpack.c.0.s8 %v1839
    %v1841 = vlaneseq
    %v1842 = vshrl.u32 %v1841, 7
    %v1843 = vsub.s32 %v1840, %v1842
    %v1844 = vrot.slane %v1837, %v1843
    %v1846 = vlaneseq
    %vm1847 = vcmp.ge.s32.totalorder %v1846, 0
    %vm1848 = vcmp.lt.s32.totalorder %v1846, 512
    %vm1849 = vmand %vm1847, %vm1848
    %1850 = vst.msk [vmem:[#allocation3] sm:$0xf] %vm1849, %v1844
    // Predicated region
    $region30: #{discriminator_forward.1} parent=1 // pred_check
      _
    $region31: #{discriminator_forward.1} parent=1 // pred_check_branch
      %1852 = sbr.rel (0) target = $region33
    $region32: #{discriminator_forward.1} parent=1 // pred_region
      %s1854 = ssub.s32 64, 64
      %1855 = vsyncadd [#allocation4], %s1854
      %s1857 = sshll.u32 [#allocation3], 4
      %s1858 = int_to_ptr.vmem [resolvable:$true] %s1857
      %1860 = dma.vmem_to_hbm [thread:$0]  %s1858, 64, %s7, [#allocation4]
    $region33: #{discriminator_forward.1} parent=1 // pred_fallthru
      _
    // Predicated region
    $region34: #{discriminator_forward.1} parent=1 // pred_check
      _
    $region35: #{discriminator_forward.1} parent=1 // pred_check_branch
      %1862 = sbr.rel (0) target = $region37
    $region36: #{discriminator_forward.1} parent=1 // pred_region
      %1863 = dma.done [#allocation4], 64
    $region37: #{discriminator_forward.1} parent=1 // pred_fallthru
      _
    %1864 = vsyncpa [#allocation4], 1

</llo_original>
